<compile_context>
chip_gen: v6e
topology: v6e:2x2x1
jax: 0.10.0
libtpu: 0.0.40
codegen_flags: <defaults>
</compile_context>

<pallas_src>
import jax
import jax.numpy as jnp
from jax.experimental import pallas as pl
from jax.experimental.pallas import tpu as pltpu

# Model dims (match the PyTorch module)
NUM_JOINTS = 17
NUM_COORDS = 3
INPUT_SIZE = NUM_JOINTS * NUM_COORDS   # 51
HIDDEN_SIZE = 64                       # H
NUM_CLASSES = 6                        # len(player_names) -- synthetic, deterministic choice

# Padded / lane-aligned sizes used inside the kernel
IP = 64                     # input contraction dim padded 51 -> 64
G4 = 4 * HIDDEN_SIZE        # 256: compact gate width (i,f,g,o each 64 lanes, no padding)
CP = 128                    # classifier output padded 6 -> 128 (lane-dense stores)


def swing_classifier_kernel(x_ref, w_ih_ref, w_hh_ref, b_ref, w_fc_ref, b_fc_ref,
                            out_ref, xw_ref):
    """Full LSTM recurrence + classifier for one batch tile.

    x_ref   : (T, Bt, IP)   time-major input (zero-padded to IP), f32
    w_ih_ref: (IP, 4H)      input->gates, gate order (i,f,g,o); g columns pre-scaled by 2
    w_hh_ref: (H, 4H)       hidden->gates, g columns pre-scaled by 2
    b_ref   : (1, 4H)       combined bias (b_ih + b_hh), g slice pre-scaled by 2
    w_fc_ref: (H, CP)       classifier weight (cols padded 6 -> 128)
    b_fc_ref: (1, CP)       classifier bias (padded)
    out_ref : (Bt, CP)      logits (lane-dense; real classes in [:, :NUM_CLASSES])
    xw_ref  : (T, Bt, 4H)   VMEM scratch: hoisted input projection, time-major
    """
    T, Bt, Ip = x_ref.shape
    H = HIDDEN_SIZE

    # ---- hoisted input projection: single MXU matmul over all timesteps ----
    # Bt is a multiple of 8, so both reshapes below are layout-free for any T.
    x2d = x_ref[...].reshape(T * Bt, Ip)
    xw = jnp.dot(x2d, w_ih_ref[...], preferred_element_type=jnp.float32) + b_ref[...]
    xw_ref[...] = xw.reshape(T, Bt, G4)            # staged in VMEM -> bounded live ranges

    w_hh = w_hh_ref[...]
    w_hh_if = w_hh[:, :2 * H]                      # (H, 128)  i,f columns
    w_hh_go = w_hh[:, 2 * H:]                      # (H, 128)  g,o columns

    h = jnp.zeros((Bt, H), jnp.float32)
    c = jnp.zeros((Bt, H), jnp.float32)

    # ---- fully-unrolled recurrence (T is static, small) ----
    # Per step: two (Bt,H)x(H,128) matmuls; EUP sigmoid on the (i,f) half can overlap
    # MXU work on the (g,o) half.  tanh(z) = 2*sigmoid(2z) - 1 (g columns pre-scaled).
    for t in range(T):
        pre = xw_ref[t]                            # (Bt, 4H), tile-aligned slab
        z_if = pre[:, :2 * H] + jnp.dot(h, w_hh_if, preferred_element_type=jnp.float32)
        s_if = jax.nn.sigmoid(z_if)
        z_go = pre[:, 2 * H:] + jnp.dot(h, w_hh_go, preferred_element_type=jnp.float32)
        s_go = jax.nn.sigmoid(z_go)

        i_g = s_if[:, :H]
        f_g = s_if[:, H:]
        g_g = 2.0 * s_go[:, :H] - 1.0              # == tanh of the original g pre-activation
        o_g = s_go[:, H:]

        c = f_g * c + i_g * g_g
        h = o_g * jnp.tanh(c)

    # TODO(synk): nn.Dropout(p=0.5) is identity at inference (eval mode); training path not implemented.
    logits = jnp.dot(h, w_fc_ref[...], preferred_element_type=jnp.float32) + b_fc_ref[...]
    out_ref[...] = logits.astype(out_ref.dtype)


def prepare_params(params):
    """Pre-transpose + lane-align LSTM/FC weights for the kernel (PyTorch layouts in).

    Gate order is PyTorch's (i, f, g, o).  Only the REAL g-gate rows/columns are scaled
    by 2 (tanh-via-sigmoid trick); there are no padded gate lanes in this layout.
    """
    H = HIDDEN_SIZE
    g_scale = jnp.concatenate([
        jnp.ones((2 * H,), jnp.float32),
        jnp.full((H,), 2.0, jnp.float32),
        jnp.ones((H,), jnp.float32),
    ])                                                              # (4H,)

    w_ih = params["w_ih"] * g_scale[:, None]                        # (4H, 51)
    w_hh = params["w_hh"] * g_scale[:, None]                        # (4H, 64)
    bias = (params["b_ih"] + params["b_hh"]) * g_scale              # (4H,)

    w_ih_p = jnp.pad(w_ih.T, ((0, IP - INPUT_SIZE), (0, 0)))        # (64, 256) zero-pad K rows
    w_hh_p = w_hh.T                                                 # (64, 256)
    b_p = bias.reshape(1, G4)                                       # (1, 256)

    w_fc_p = jnp.pad(params["w_fc"].T, ((0, 0), (0, CP - NUM_CLASSES)))      # (64, 128)
    b_fc_p = jnp.pad(params["b_fc"], (0, CP - NUM_CLASSES)).reshape(1, CP)   # (1, 128)
    return w_ih_p, w_hh_p, b_p, w_fc_p, b_fc_p


def _pick_block_b(B):
    """Batch tile size: multiple of 8; single tile for small B; >=2 tiles for mid-size B
    (keeps both v7x TensorCores busy); 256-row tiles for large B (fills 256-wide MXU)."""
    if B <= 128:
        return max(8, ((B + 7) // 8) * 8)
    if B <= 512:
        half = ((-(-B // 2)) + 7) // 8 * 8
        return min(256, half)
    return 256


def swing_classifier_forward(x, params):
    """x: (B, T, 17, 3) float32.  Returns logits (B, num_classes)."""
    B, T, J, C = x.shape
    assert J * C == INPUT_SIZE
    x2 = x.reshape(B, T, INPUT_SIZE)                               # view(batch, seq, 51)

    block_b = _pick_block_b(B)
    bp = pl.cdiv(B, block_b) * block_b

    # Time-major + lane pad: (T, bp, IP).  x is tiny, so this extra HBM pass is negligible
    # and buys layout-free reshapes + clean per-step reads inside the kernel.
    x_tm = jnp.transpose(x2, (1, 0, 2))
    x_tm = jnp.pad(x_tm, ((0, 0), (0, bp - B), (0, IP - INPUT_SIZE)))

    w_ih_p, w_hh_p, b_p, w_fc_p, b_fc_p = prepare_params(params)

    out = pl.pallas_call(
        swing_classifier_kernel,
        out_shape=jax.ShapeDtypeStruct((bp, CP), jnp.float32),
        grid=(bp // block_b,),
        in_specs=[
            pl.BlockSpec((T, block_b, IP), lambda i: (0, i, 0)),
            pl.BlockSpec((IP, G4), lambda i: (0, 0)),
            pl.BlockSpec((HIDDEN_SIZE, G4), lambda i: (0, 0)),
            pl.BlockSpec((1, G4), lambda i: (0, 0)),
            pl.BlockSpec((HIDDEN_SIZE, CP), lambda i: (0, 0)),
            pl.BlockSpec((1, CP), lambda i: (0, 0)),
        ],
        out_specs=pl.BlockSpec((block_b, CP), lambda i: (i, 0)),
        scratch_shapes=[pltpu.VMEM((T, block_b, G4), jnp.float32)],
        compiler_params=pltpu.CompilerParams(dimension_semantics=("parallel",)),
    )(x_tm, w_ih_p, w_hh_p, b_p, w_fc_p, b_fc_p)

    return out[:B, :NUM_CLASSES]


def reference_forward(x, params):
    """Pure-JAX reference matching torch.nn.LSTM + Linear semantics."""
    B, T, J, C = x.shape
    xs = x.reshape(B, T, J * C)
    H = HIDDEN_SIZE
    h = jnp.zeros((B, H), jnp.float32)
    c = jnp.zeros((B, H), jnp.float32)
    for t in range(T):
        gates = (xs[:, t, :] @ params["w_ih"].T + h @ params["w_hh"].T
                 + params["b_ih"] + params["b_hh"])
        i_g = jax.nn.sigmoid(gates[:, 0 * H:1 * H])
        f_g = jax.nn.sigmoid(gates[:, 1 * H:2 * H])
        g_g = jnp.tanh(gates[:, 2 * H:3 * H])
        o_g = jax.nn.sigmoid(gates[:, 3 * H:4 * H])
        c = f_g * c + i_g * g_g
        h = o_g * jnp.tanh(c)
    return h @ params["w_fc"].T + params["b_fc"]


def init_params(key):
    k = jax.random.split(key, 6)
    bound = 1.0 / jnp.sqrt(HIDDEN_SIZE)
    return {
        "w_ih": jax.random.uniform(k[0], (4 * HIDDEN_SIZE, INPUT_SIZE), jnp.float32, -bound, bound),
        "w_hh": jax.random.uniform(k[1], (4 * HIDDEN_SIZE, HIDDEN_SIZE), jnp.float32, -bound, bound),
        "b_ih": jax.random.uniform(k[2], (4 * HIDDEN_SIZE,), jnp.float32, -bound, bound),
        "b_hh": jax.random.uniform(k[3], (4 * HIDDEN_SIZE,), jnp.float32, -bound, bound),
        "w_fc": jax.random.uniform(k[4], (NUM_CLASSES, HIDDEN_SIZE), jnp.float32, -bound, bound),
        "b_fc": jax.random.uniform(k[5], (NUM_CLASSES,), jnp.float32, -bound, bound),
    }


if __name__ == "__main__":
    key = jax.random.PRNGKey(0)
    k_x, k_p = jax.random.split(key)

    B, T = 2, 8
    x = jax.random.normal(k_x, (B, T, NUM_JOINTS, NUM_COORDS), dtype=jnp.float32)
    params = init_params(k_p)

    out = jax.block_until_ready(swing_classifier_forward(x, params))

    ref = reference_forward(x, params)
    assert out.shape == (B, NUM_CLASSES)
    if not jnp.allclose(out, ref, atol=1e-4, rtol=1e-4):
        raise AssertionError("Pallas kernel output does not match reference")

    print("KERNEL_OK")
</pallas_src>

<mosaic_0001>
module attributes {stable_mosaic.version = 11 : i64} {
  func.func @swing_classifier_kernel(%arg0: i32, %arg1: memref<8x8x64xf32, #tpu.memory_space<vmem>>, %arg2: memref<64x256xf32, #tpu.memory_space<vmem>>, %arg3: memref<64x256xf32, #tpu.memory_space<vmem>>, %arg4: memref<1x256xf32, #tpu.memory_space<vmem>>, %arg5: memref<64x128xf32, #tpu.memory_space<vmem>>, %arg6: memref<1x128xf32, #tpu.memory_space<vmem>>, %arg7: memref<8x128xf32, #tpu.memory_space<vmem>>, %arg8: memref<8x8x256xf32, #tpu.memory_space<vmem>>) attributes {dimension_semantics = [#tpu.dimension_semantics<parallel>], iteration_bounds = array<i64: 1>, scalar_prefetch = 0 : i64, scratch_operands = 1 : i64, tpu.core_type = #tpu.core_type<tc>, window_params = [{transform_indices = @transform_0, window_bounds = array<i64: 8, 8, 64>}, {pipeline_mode = #tpu.pipeline_mode<synchronous>, transform_indices = @transform_1, window_bounds = array<i64: 64, 256>}, {pipeline_mode = #tpu.pipeline_mode<synchronous>, transform_indices = @transform_2, window_bounds = array<i64: 64, 256>}, {pipeline_mode = #tpu.pipeline_mode<synchronous>, transform_indices = @transform_3, window_bounds = array<i64: 1, 256>}, {pipeline_mode = #tpu.pipeline_mode<synchronous>, transform_indices = @transform_4, window_bounds = array<i64: 64, 128>}, {pipeline_mode = #tpu.pipeline_mode<synchronous>, transform_indices = @transform_5, window_bounds = array<i64: 1, 128>}, {transform_indices = @transform_6, window_bounds = array<i64: 8, 128>}]} {
    %c0 = arith.constant 0 : index
    %c0_0 = arith.constant 0 : index
    %c0_1 = arith.constant 0 : index
    %0 = vector.load %arg1[%c0, %c0_0, %c0_1] : memref<8x8x64xf32, #tpu.memory_space<vmem>>, vector<8x8x64xf32>
    %1 = vector.shape_cast %0 : vector<8x8x64xf32> to vector<64x64xf32>
    %c0_2 = arith.constant 0 : index
    %c0_3 = arith.constant 0 : index
    %2 = vector.load %arg2[%c0_2, %c0_3] : memref<64x256xf32, #tpu.memory_space<vmem>>, vector<64x256xf32>
    %cst = arith.constant dense<0.000000e+00> : vector<64x256xf32>
    %3 = tpu.matmul %1, %2, %cst {dimension_numbers = #tpu.dot_dimension_numbers<[1], [0], [0], [1], [0, 0, 1, 1], [], []>} : vector<64x64xf32>, vector<64x256xf32>, vector<64x256xf32> -> vector<64x256xf32>
    %c0_4 = arith.constant 0 : index
    %c0_5 = arith.constant 0 : index
    %4 = vector.load %arg4[%c0_4, %c0_5] : memref<1x256xf32, #tpu.memory_space<vmem>>, vector<1x256xf32>
    %5 = vector.broadcast %4 : vector<1x256xf32> to vector<64x256xf32>
    %6 = arith.addf %3, %5 : vector<64x256xf32>
    %7 = vector.shape_cast %6 : vector<64x256xf32> to vector<8x8x256xf32>
    %c0_6 = arith.constant 0 : index
    %c0_7 = arith.constant 0 : index
    %c0_8 = arith.constant 0 : index
    %8 = vector.load %arg8[%c0_6, %c0_7, %c0_8] : memref<8x8x256xf32, #tpu.memory_space<vmem>>, vector<8x8x256xf32>
    tpu.vector_store %arg8[%c0_6, %c0_7, %c0_8], %7 {strides = array<i32>} : memref<8x8x256xf32, #tpu.memory_space<vmem>>, vector<8x8x256xf32>,
    %c0_9 = arith.constant 0 : index
    %c0_10 = arith.constant 0 : index
    %9 = vector.load %arg3[%c0_9, %c0_10] : memref<64x256xf32, #tpu.memory_space<vmem>>, vector<64x256xf32>
    %10 = vector.extract_strided_slice %9 {offsets = [0, 0], sizes = [64, 128], strides = [1, 1]} : vector<64x256xf32> to vector<64x128xf32>
    %11 = vector.extract_strided_slice %9 {offsets = [0, 128], sizes = [64, 128], strides = [1, 1]} : vector<64x256xf32> to vector<64x128xf32>
    %cst_11 = arith.constant 0.000000e+00 : f32
    %12 = vector.broadcast %cst_11 : f32 to vector<8x64xf32>
    %cst_12 = arith.constant 0.000000e+00 : f32
    %13 = vector.broadcast %cst_12 : f32 to vector<8x64xf32>
    %c0_13 = arith.constant 0 : index
    %c0_14 = arith.constant 0 : index
    %c0_15 = arith.constant 0 : index
    %14 = vector.load %arg8[%c0_13, %c0_14, %c0_15] : memref<8x8x256xf32, #tpu.memory_space<vmem>>, vector<1x8x256xf32>
    %15 = vector.shape_cast %14 : vector<1x8x256xf32> to vector<8x256xf32>
    %16 = vector.extract_strided_slice %15 {offsets = [0, 0], sizes = [8, 128], strides = [1, 1]} : vector<8x256xf32> to vector<8x128xf32>
    %cst_16 = arith.constant dense<0.000000e+00> : vector<8x128xf32>
    %17 = tpu.matmul %12, %10, %cst_16 {dimension_numbers = #tpu.dot_dimension_numbers<[1], [0], [0], [1], [0, 0, 1, 1], [], []>} : vector<8x64xf32>, vector<64x128xf32>, vector<8x128xf32> -> vector<8x128xf32>
    %18 = arith.addf %16, %17 : vector<8x128xf32>
    %19 = arith.negf %18 : vector<8x128xf32>
    %20 = math.exp %19 : vector<8x128xf32>
    %cst_17 = arith.constant 1.000000e+00 : f32
    %21 = vector.broadcast %cst_17 : f32 to vector<8x128xf32>
    %22 = arith.addf %21, %20 : vector<8x128xf32>
    %23 = arith.divf %21, %22 : vector<8x128xf32>
    %24 = vector.extract_strided_slice %15 {offsets = [0, 128], sizes = [8, 128], strides = [1, 1]} : vector<8x256xf32> to vector<8x128xf32>
    %cst_18 = arith.constant dense<0.000000e+00> : vector<8x128xf32>
    %25 = tpu.matmul %12, %11, %cst_18 {dimension_numbers = #tpu.dot_dimension_numbers<[1], [0], [0], [1], [0, 0, 1, 1], [], []>} : vector<8x64xf32>, vector<64x128xf32>, vector<8x128xf32> -> vector<8x128xf32>
    %26 = arith.addf %24, %25 : vector<8x128xf32>
    %27 = arith.negf %26 : vector<8x128xf32>
    %28 = math.exp %27 : vector<8x128xf32>
    %cst_19 = arith.constant 1.000000e+00 : f32
    %29 = vector.broadcast %cst_19 : f32 to vector<8x128xf32>
    %30 = arith.addf %29, %28 : vector<8x128xf32>
    %31 = arith.divf %29, %30 : vector<8x128xf32>
    %32 = vector.extract_strided_slice %23 {offsets = [0, 0], sizes = [8, 64], strides = [1, 1]} : vector<8x128xf32> to vector<8x64xf32>
    %33 = vector.extract_strided_slice %23 {offsets = [0, 64], sizes = [8, 64], strides = [1, 1]} : vector<8x128xf32> to vector<8x64xf32>
    %34 = vector.extract_strided_slice %31 {offsets = [0, 0], sizes = [8, 64], strides = [1, 1]} : vector<8x128xf32> to vector<8x64xf32>
    %cst_20 = arith.constant 2.000000e+00 : f32
    %35 = vector.broadcast %cst_20 : f32 to vector<8x64xf32>
    %36 = arith.mulf %35, %34 : vector<8x64xf32>
    %cst_21 = arith.constant 1.000000e+00 : f32
    %37 = vector.broadcast %cst_21 : f32 to vector<8x64xf32>
    %38 = arith.subf %36, %37 : vector<8x64xf32>
    %39 = vector.extract_strided_slice %31 {offsets = [0, 64], sizes = [8, 64], strides = [1, 1]} : vector<8x128xf32> to vector<8x64xf32>
    %40 = arith.mulf %33, %13 : vector<8x64xf32>
    %41 = arith.mulf %32, %38 : vector<8x64xf32>
    %42 = arith.addf %40, %41 : vector<8x64xf32>
    %43 = math.tanh %42 : vector<8x64xf32>
    %44 = arith.mulf %39, %43 : vector<8x64xf32>
    %c1 = arith.constant 1 : index
    %c0_22 = arith.constant 0 : index
    %c0_23 = arith.constant 0 : index
    %45 = vector.load %arg8[%c1, %c0_22, %c0_23] : memref<8x8x256xf32, #tpu.memory_space<vmem>>, vector<1x8x256xf32>
    %46 = vector.shape_cast %45 : vector<1x8x256xf32> to vector<8x256xf32>
    %47 = vector.extract_strided_slice %46 {offsets = [0, 0], sizes = [8, 128], strides = [1, 1]} : vector<8x256xf32> to vector<8x128xf32>
    %cst_24 = arith.constant dense<0.000000e+00> : vector<8x128xf32>
    %48 = tpu.matmul %44, %10, %cst_24 {dimension_numbers = #tpu.dot_dimension_numbers<[1], [0], [0], [1], [0, 0, 1, 1], [], []>} : vector<8x64xf32>, vector<64x128xf32>, vector<8x128xf32> -> vector<8x128xf32>
    %49 = arith.addf %47, %48 : vector<8x128xf32>
    %50 = arith.negf %49 : vector<8x128xf32>
    %51 = math.exp %50 : vector<8x128xf32>
    %cst_25 = arith.constant 1.000000e+00 : f32
    %52 = vector.broadcast %cst_25 : f32 to vector<8x128xf32>
    %53 = arith.addf %52, %51 : vector<8x128xf32>
    %54 = arith.divf %52, %53 : vector<8x128xf32>
    %55 = vector.extract_strided_slice %46 {offsets = [0, 128], sizes = [8, 128], strides = [1, 1]} : vector<8x256xf32> to vector<8x128xf32>
    %cst_26 = arith.constant dense<0.000000e+00> : vector<8x128xf32>
    %56 = tpu.matmul %44, %11, %cst_26 {dimension_numbers = #tpu.dot_dimension_numbers<[1], [0], [0], [1], [0, 0, 1, 1], [], []>} : vector<8x64xf32>, vector<64x128xf32>, vector<8x128xf32> -> vector<8x128xf32>
    %57 = arith.addf %55, %56 : vector<8x128xf32>
    %58 = arith.negf %57 : vector<8x128xf32>
    %59 = math.exp %58 : vector<8x128xf32>
    %cst_27 = arith.constant 1.000000e+00 : f32
    %60 = vector.broadcast %cst_27 : f32 to vector<8x128xf32>
    %61 = arith.addf %60, %59 : vector<8x128xf32>
    %62 = arith.divf %60, %61 : vector<8x128xf32>
    %63 = vector.extract_strided_slice %54 {offsets = [0, 0], sizes = [8, 64], strides = [1, 1]} : vector<8x128xf32> to vector<8x64xf32>
    %64 = vector.extract_strided_slice %54 {offsets = [0, 64], sizes = [8, 64], strides = [1, 1]} : vector<8x128xf32> to vector<8x64xf32>
    %65 = vector.extract_strided_slice %62 {offsets = [0, 0], sizes = [8, 64], strides = [1, 1]} : vector<8x128xf32> to vector<8x64xf32>
    %cst_28 = arith.constant 2.000000e+00 : f32
    %66 = vector.broadcast %cst_28 : f32 to vector<8x64xf32>
    %67 = arith.mulf %66, %65 : vector<8x64xf32>
    %cst_29 = arith.constant 1.000000e+00 : f32
    %68 = vector.broadcast %cst_29 : f32 to vector<8x64xf32>
    %69 = arith.subf %67, %68 : vector<8x64xf32>
    %70 = vector.extract_strided_slice %62 {offsets = [0, 64], sizes = [8, 64], strides = [1, 1]} : vector<8x128xf32> to vector<8x64xf32>
    %71 = arith.mulf %64, %42 : vector<8x64xf32>
    %72 = arith.mulf %63, %69 : vector<8x64xf32>
    %73 = arith.addf %71, %72 : vector<8x64xf32>
    %74 = math.tanh %73 : vector<8x64xf32>
    %75 = arith.mulf %70, %74 : vector<8x64xf32>
    %c2 = arith.constant 2 : index
    %c0_30 = arith.constant 0 : index
    %c0_31 = arith.constant 0 : index
    %76 = vector.load %arg8[%c2, %c0_30, %c0_31] : memref<8x8x256xf32, #tpu.memory_space<vmem>>, vector<1x8x256xf32>
    %77 = vector.shape_cast %76 : vector<1x8x256xf32> to vector<8x256xf32>
    %78 = vector.extract_strided_slice %77 {offsets = [0, 0], sizes = [8, 128], strides = [1, 1]} : vector<8x256xf32> to vector<8x128xf32>
    %cst_32 = arith.constant dense<0.000000e+00> : vector<8x128xf32>
    %79 = tpu.matmul %75, %10, %cst_32 {dimension_numbers = #tpu.dot_dimension_numbers<[1], [0], [0], [1], [0, 0, 1, 1], [], []>} : vector<8x64xf32>, vector<64x128xf32>, vector<8x128xf32> -> vector<8x128xf32>
    %80 = arith.addf %78, %79 : vector<8x128xf32>
    %81 = arith.negf %80 : vector<8x128xf32>
    %82 = math.exp %81 : vector<8x128xf32>
    %cst_33 = arith.constant 1.000000e+00 : f32
    %83 = vector.broadcast %cst_33 : f32 to vector<8x128xf32>
    %84 = arith.addf %83, %82 : vector<8x128xf32>
    %85 = arith.divf %83, %84 : vector<8x128xf32>
    %86 = vector.extract_strided_slice %77 {offsets = [0, 128], sizes = [8, 128], strides = [1, 1]} : vector<8x256xf32> to vector<8x128xf32>
    %cst_34 = arith.constant dense<0.000000e+00> : vector<8x128xf32>
    %87 = tpu.matmul %75, %11, %cst_34 {dimension_numbers = #tpu.dot_dimension_numbers<[1], [0], [0], [1], [0, 0, 1, 1], [], []>} : vector<8x64xf32>, vector<64x128xf32>, vector<8x128xf32> -> vector<8x128xf32>
    %88 = arith.addf %86, %87 : vector<8x128xf32>
    %89 = arith.negf %88 : vector<8x128xf32>
    %90 = math.exp %89 : vector<8x128xf32>
    %cst_35 = arith.constant 1.000000e+00 : f32
    %91 = vector.broadcast %cst_35 : f32 to vector<8x128xf32>
    %92 = arith.addf %91, %90 : vector<8x128xf32>
    %93 = arith.divf %91, %92 : vector<8x128xf32>
    %94 = vector.extract_strided_slice %85 {offsets = [0, 0], sizes = [8, 64], strides = [1, 1]} : vector<8x128xf32> to vector<8x64xf32>
    %95 = vector.extract_strided_slice %85 {offsets = [0, 64], sizes = [8, 64], strides = [1, 1]} : vector<8x128xf32> to vector<8x64xf32>
    %96 = vector.extract_strided_slice %93 {offsets = [0, 0], sizes = [8, 64], strides = [1, 1]} : vector<8x128xf32> to vector<8x64xf32>
    %cst_36 = arith.constant 2.000000e+00 : f32
    %97 = vector.broadcast %cst_36 : f32 to vector<8x64xf32>
    %98 = arith.mulf %97, %96 : vector<8x64xf32>
    %cst_37 = arith.constant 1.000000e+00 : f32
    %99 = vector.broadcast %cst_37 : f32 to vector<8x64xf32>
    %100 = arith.subf %98, %99 : vector<8x64xf32>
    %101 = vector.extract_strided_slice %93 {offsets = [0, 64], sizes = [8, 64], strides = [1, 1]} : vector<8x128xf32> to vector<8x64xf32>
    %102 = arith.mulf %95, %73 : vector<8x64xf32>
    %103 = arith.mulf %94, %100 : vector<8x64xf32>
    %104 = arith.addf %102, %103 : vector<8x64xf32>
    %105 = math.tanh %104 : vector<8x64xf32>
    %106 = arith.mulf %101, %105 : vector<8x64xf32>
    %c3 = arith.constant 3 : index
    %c0_38 = arith.constant 0 : index
    %c0_39 = arith.constant 0 : index
    %107 = vector.load %arg8[%c3, %c0_38, %c0_39] : memref<8x8x256xf32, #tpu.memory_space<vmem>>, vector<1x8x256xf32>
    %108 = vector.shape_cast %107 : vector<1x8x256xf32> to vector<8x256xf32>
    %109 = vector.extract_strided_slice %108 {offsets = [0, 0], sizes = [8, 128], strides = [1, 1]} : vector<8x256xf32> to vector<8x128xf32>
    %cst_40 = arith.constant dense<0.000000e+00> : vector<8x128xf32>
    %110 = tpu.matmul %106, %10, %cst_40 {dimension_numbers = #tpu.dot_dimension_numbers<[1], [0], [0], [1], [0, 0, 1, 1], [], []>} : vector<8x64xf32>, vector<64x128xf32>, vector<8x128xf32> -> vector<8x128xf32>
    %111 = arith.addf %109, %110 : vector<8x128xf32>
    %112 = arith.negf %111 : vector<8x128xf32>
    %113 = math.exp %112 : vector<8x128xf32>
    %cst_41 = arith.constant 1.000000e+00 : f32
    %114 = vector.broadcast %cst_41 : f32 to vector<8x128xf32>
    %115 = arith.addf %114, %113 : vector<8x128xf32>
    %116 = arith.divf %114, %115 : vector<8x128xf32>
    %117 = vector.extract_strided_slice %108 {offsets = [0, 128], sizes = [8, 128], strides = [1, 1]} : vector<8x256xf32> to vector<8x128xf32>
    %cst_42 = arith.constant dense<0.000000e+00> : vector<8x128xf32>
    %118 = tpu.matmul %106, %11, %cst_42 {dimension_numbers = #tpu.dot_dimension_numbers<[1], [0], [0], [1], [0, 0, 1, 1], [], []>} : vector<8x64xf32>, vector<64x128xf32>, vector<8x128xf32> -> vector<8x128xf32>
    %119 = arith.addf %117, %118 : vector<8x128xf32>
    %120 = arith.negf %119 : vector<8x128xf32>
    %121 = math.exp %120 : vector<8x128xf32>
    %cst_43 = arith.constant 1.000000e+00 : f32
    %122 = vector.broadcast %cst_43 : f32 to vector<8x128xf32>
    %123 = arith.addf %122, %121 : vector<8x128xf32>
    %124 = arith.divf %122, %123 : vector<8x128xf32>
    %125 = vector.extract_strided_slice %116 {offsets = [0, 0], sizes = [8, 64], strides = [1, 1]} : vector<8x128xf32> to vector<8x64xf32>
    %126 = vector.extract_strided_slice %116 {offsets = [0, 64], sizes = [8, 64], strides = [1, 1]} : vector<8x128xf32> to vector<8x64xf32>
    %127 = vector.extract_strided_slice %124 {offsets = [0, 0], sizes = [8, 64], strides = [1, 1]} : vector<8x128xf32> to vector<8x64xf32>
    %cst_44 = arith.constant 2.000000e+00 : f32
    %128 = vector.broadcast %cst_44 : f32 to vector<8x64xf32>
    %129 = arith.mulf %128, %127 : vector<8x64xf32>
    %cst_45 = arith.constant 1.000000e+00 : f32
    %130 = vector.broadcast %cst_45 : f32 to vector<8x64xf32>
    %131 = arith.subf %129, %130 : vector<8x64xf32>
    %132 = vector.extract_strided_slice %124 {offsets = [0, 64], sizes = [8, 64], strides = [1, 1]} : vector<8x128xf32> to vector<8x64xf32>
    %133 = arith.mulf %126, %104 : vector<8x64xf32>
    %134 = arith.mulf %125, %131 : vector<8x64xf32>
    %135 = arith.addf %133, %134 : vector<8x64xf32>
    %136 = math.tanh %135 : vector<8x64xf32>
    %137 = arith.mulf %132, %136 : vector<8x64xf32>
    %c4 = arith.constant 4 : index
    %c0_46 = arith.constant 0 : index
    %c0_47 = arith.constant 0 : index
    %138 = vector.load %arg8[%c4, %c0_46, %c0_47] : memref<8x8x256xf32, #tpu.memory_space<vmem>>, vector<1x8x256xf32>
    %139 = vector.shape_cast %138 : vector<1x8x256xf32> to vector<8x256xf32>
    %140 = vector.extract_strided_slice %139 {offsets = [0, 0], sizes = [8, 128], strides = [1, 1]} : vector<8x256xf32> to vector<8x128xf32>
    %cst_48 = arith.constant dense<0.000000e+00> : vector<8x128xf32>
    %141 = tpu.matmul %137, %10, %cst_48 {dimension_numbers = #tpu.dot_dimension_numbers<[1], [0], [0], [1], [0, 0, 1, 1], [], []>} : vector<8x64xf32>, vector<64x128xf32>, vector<8x128xf32> -> vector<8x128xf32>
    %142 = arith.addf %140, %141 : vector<8x128xf32>
    %143 = arith.negf %142 : vector<8x128xf32>
    %144 = math.exp %143 : vector<8x128xf32>
    %cst_49 = arith.constant 1.000000e+00 : f32
    %145 = vector.broadcast %cst_49 : f32 to vector<8x128xf32>
    %146 = arith.addf %145, %144 : vector<8x128xf32>
    %147 = arith.divf %145, %146 : vector<8x128xf32>
    %148 = vector.extract_strided_slice %139 {offsets = [0, 128], sizes = [8, 128], strides = [1, 1]} : vector<8x256xf32> to vector<8x128xf32>
    %cst_50 = arith.constant dense<0.000000e+00> : vector<8x128xf32>
    %149 = tpu.matmul %137, %11, %cst_50 {dimension_numbers = #tpu.dot_dimension_numbers<[1], [0], [0], [1], [0, 0, 1, 1], [], []>} : vector<8x64xf32>, vector<64x128xf32>, vector<8x128xf32> -> vector<8x128xf32>
    %150 = arith.addf %148, %149 : vector<8x128xf32>
    %151 = arith.negf %150 : vector<8x128xf32>
    %152 = math.exp %151 : vector<8x128xf32>
    %cst_51 = arith.constant 1.000000e+00 : f32
    %153 = vector.broadcast %cst_51 : f32 to vector<8x128xf32>
    %154 = arith.addf %153, %152 : vector<8x128xf32>
    %155 = arith.divf %153, %154 : vector<8x128xf32>
    %156 = vector.extract_strided_slice %147 {offsets = [0, 0], sizes = [8, 64], strides = [1, 1]} : vector<8x128xf32> to vector<8x64xf32>
    %157 = vector.extract_strided_slice %147 {offsets = [0, 64], sizes = [8, 64], strides = [1, 1]} : vector<8x128xf32> to vector<8x64xf32>
    %158 = vector.extract_strided_slice %155 {offsets = [0, 0], sizes = [8, 64], strides = [1, 1]} : vector<8x128xf32> to vector<8x64xf32>
    %cst_52 = arith.constant 2.000000e+00 : f32
    %159 = vector.broadcast %cst_52 : f32 to vector<8x64xf32>
    %160 = arith.mulf %159, %158 : vector<8x64xf32>
    %cst_53 = arith.constant 1.000000e+00 : f32
    %161 = vector.broadcast %cst_53 : f32 to vector<8x64xf32>
    %162 = arith.subf %160, %161 : vector<8x64xf32>
    %163 = vector.extract_strided_slice %155 {offsets = [0, 64], sizes = [8, 64], strides = [1, 1]} : vector<8x128xf32> to vector<8x64xf32>
    %164 = arith.mulf %157, %135 : vector<8x64xf32>
    %165 = arith.mulf %156, %162 : vector<8x64xf32>
    %166 = arith.addf %164, %165 : vector<8x64xf32>
    %167 = math.tanh %166 : vector<8x64xf32>
    %168 = arith.mulf %163, %167 : vector<8x64xf32>
    %c5 = arith.constant 5 : index
    %c0_54 = arith.constant 0 : index
    %c0_55 = arith.constant 0 : index
    %169 = vector.load %arg8[%c5, %c0_54, %c0_55] : memref<8x8x256xf32, #tpu.memory_space<vmem>>, vector<1x8x256xf32>
    %170 = vector.shape_cast %169 : vector<1x8x256xf32> to vector<8x256xf32>
    %171 = vector.extract_strided_slice %170 {offsets = [0, 0], sizes = [8, 128], strides = [1, 1]} : vector<8x256xf32> to vector<8x128xf32>
    %cst_56 = arith.constant dense<0.000000e+00> : vector<8x128xf32>
    %172 = tpu.matmul %168, %10, %cst_56 {dimension_numbers = #tpu.dot_dimension_numbers<[1], [0], [0], [1], [0, 0, 1, 1], [], []>} : vector<8x64xf32>, vector<64x128xf32>, vector<8x128xf32> -> vector<8x128xf32>
    %173 = arith.addf %171, %172 : vector<8x128xf32>
    %174 = arith.negf %173 : vector<8x128xf32>
    %175 = math.exp %174 : vector<8x128xf32>
    %cst_57 = arith.constant 1.000000e+00 : f32
    %176 = vector.broadcast %cst_57 : f32 to vector<8x128xf32>
    %177 = arith.addf %176, %175 : vector<8x128xf32>
    %178 = arith.divf %176, %177 : vector<8x128xf32>
    %179 = vector.extract_strided_slice %170 {offsets = [0, 128], sizes = [8, 128], strides = [1, 1]} : vector<8x256xf32> to vector<8x128xf32>
    %cst_58 = arith.constant dense<0.000000e+00> : vector<8x128xf32>
    %180 = tpu.matmul %168, %11, %cst_58 {dimension_numbers = #tpu.dot_dimension_numbers<[1], [0], [0], [1], [0, 0, 1, 1], [], []>} : vector<8x64xf32>, vector<64x128xf32>, vector<8x128xf32> -> vector<8x128xf32>
    %181 = arith.addf %179, %180 : vector<8x128xf32>
    %182 = arith.negf %181 : vector<8x128xf32>
    %183 = math.exp %182 : vector<8x128xf32>
    %cst_59 = arith.constant 1.000000e+00 : f32
    %184 = vector.broadcast %cst_59 : f32 to vector<8x128xf32>
    %185 = arith.addf %184, %183 : vector<8x128xf32>
    %186 = arith.divf %184, %185 : vector<8x128xf32>
    %187 = vector.extract_strided_slice %178 {offsets = [0, 0], sizes = [8, 64], strides = [1, 1]} : vector<8x128xf32> to vector<8x64xf32>
    %188 = vector.extract_strided_slice %178 {offsets = [0, 64], sizes = [8, 64], strides = [1, 1]} : vector<8x128xf32> to vector<8x64xf32>
    %189 = vector.extract_strided_slice %186 {offsets = [0, 0], sizes = [8, 64], strides = [1, 1]} : vector<8x128xf32> to vector<8x64xf32>
    %cst_60 = arith.constant 2.000000e+00 : f32
    %190 = vector.broadcast %cst_60 : f32 to vector<8x64xf32>
    %191 = arith.mulf %190, %189 : vector<8x64xf32>
    %cst_61 = arith.constant 1.000000e+00 : f32
    %192 = vector.broadcast %cst_61 : f32 to vector<8x64xf32>
    %193 = arith.subf %191, %192 : vector<8x64xf32>
    %194 = vector.extract_strided_slice %186 {offsets = [0, 64], sizes = [8, 64], strides = [1, 1]} : vector<8x128xf32> to vector<8x64xf32>
    %195 = arith.mulf %188, %166 : vector<8x64xf32>
    %196 = arith.mulf %187, %193 : vector<8x64xf32>
    %197 = arith.addf %195, %196 : vector<8x64xf32>
    %198 = math.tanh %197 : vector<8x64xf32>
    %199 = arith.mulf %194, %198 : vector<8x64xf32>
    %c6 = arith.constant 6 : index
    %c0_62 = arith.constant 0 : index
    %c0_63 = arith.constant 0 : index
    %200 = vector.load %arg8[%c6, %c0_62, %c0_63] : memref<8x8x256xf32, #tpu.memory_space<vmem>>, vector<1x8x256xf32>
    %201 = vector.shape_cast %200 : vector<1x8x256xf32> to vector<8x256xf32>
    %202 = vector.extract_strided_slice %201 {offsets = [0, 0], sizes = [8, 128], strides = [1, 1]} : vector<8x256xf32> to vector<8x128xf32>
    %cst_64 = arith.constant dense<0.000000e+00> : vector<8x128xf32>
    %203 = tpu.matmul %199, %10, %cst_64 {dimension_numbers = #tpu.dot_dimension_numbers<[1], [0], [0], [1], [0, 0, 1, 1], [], []>} : vector<8x64xf32>, vector<64x128xf32>, vector<8x128xf32> -> vector<8x128xf32>
    %204 = arith.addf %202, %203 : vector<8x128xf32>
    %205 = arith.negf %204 : vector<8x128xf32>
    %206 = math.exp %205 : vector<8x128xf32>
    %cst_65 = arith.constant 1.000000e+00 : f32
    %207 = vector.broadcast %cst_65 : f32 to vector<8x128xf32>
    %208 = arith.addf %207, %206 : vector<8x128xf32>
    %209 = arith.divf %207, %208 : vector<8x128xf32>
    %210 = vector.extract_strided_slice %201 {offsets = [0, 128], sizes = [8, 128], strides = [1, 1]} : vector<8x256xf32> to vector<8x128xf32>
    %cst_66 = arith.constant dense<0.000000e+00> : vector<8x128xf32>
    %211 = tpu.matmul %199, %11, %cst_66 {dimension_numbers = #tpu.dot_dimension_numbers<[1], [0], [0], [1], [0, 0, 1, 1], [], []>} : vector<8x64xf32>, vector<64x128xf32>, vector<8x128xf32> -> vector<8x128xf32>
    %212 = arith.addf %210, %211 : vector<8x128xf32>
    %213 = arith.negf %212 : vector<8x128xf32>
    %214 = math.exp %213 : vector<8x128xf32>
    %cst_67 = arith.constant 1.000000e+00 : f32
    %215 = vector.broadcast %cst_67 : f32 to vector<8x128xf32>
    %216 = arith.addf %215, %214 : vector<8x128xf32>
    %217 = arith.divf %215, %216 : vector<8x128xf32>
    %218 = vector.extract_strided_slice %209 {offsets = [0, 0], sizes = [8, 64], strides = [1, 1]} : vector<8x128xf32> to vector<8x64xf32>
    %219 = vector.extract_strided_slice %209 {offsets = [0, 64], sizes = [8, 64], strides = [1, 1]} : vector<8x128xf32> to vector<8x64xf32>
    %220 = vector.extract_strided_slice %217 {offsets = [0, 0], sizes = [8, 64], strides = [1, 1]} : vector<8x128xf32> to vector<8x64xf32>
    %cst_68 = arith.constant 2.000000e+00 : f32
    %221 = vector.broadcast %cst_68 : f32 to vector<8x64xf32>
    %222 = arith.mulf %221, %220 : vector<8x64xf32>
    %cst_69 = arith.constant 1.000000e+00 : f32
    %223 = vector.broadcast %cst_69 : f32 to vector<8x64xf32>
    %224 = arith.subf %222, %223 : vector<8x64xf32>
    %225 = vector.extract_strided_slice %217 {offsets = [0, 64], sizes = [8, 64], strides = [1, 1]} : vector<8x128xf32> to vector<8x64xf32>
    %226 = arith.mulf %219, %197 : vector<8x64xf32>
    %227 = arith.mulf %218, %224 : vector<8x64xf32>
    %228 = arith.addf %226, %227 : vector<8x64xf32>
    %229 = math.tanh %228 : vector<8x64xf32>
    %230 = arith.mulf %225, %229 : vector<8x64xf32>
    %c7 = arith.constant 7 : index
    %c0_70 = arith.constant 0 : index
    %c0_71 = arith.constant 0 : index
    %231 = vector.load %arg8[%c7, %c0_70, %c0_71] : memref<8x8x256xf32, #tpu.memory_space<vmem>>, vector<1x8x256xf32>
    %232 = vector.shape_cast %231 : vector<1x8x256xf32> to vector<8x256xf32>
    %233 = vector.extract_strided_slice %232 {offsets = [0, 0], sizes = [8, 128], strides = [1, 1]} : vector<8x256xf32> to vector<8x128xf32>
    %cst_72 = arith.constant dense<0.000000e+00> : vector<8x128xf32>
    %234 = tpu.matmul %230, %10, %cst_72 {dimension_numbers = #tpu.dot_dimension_numbers<[1], [0], [0], [1], [0, 0, 1, 1], [], []>} : vector<8x64xf32>, vector<64x128xf32>, vector<8x128xf32> -> vector<8x128xf32>
    %235 = arith.addf %233, %234 : vector<8x128xf32>
    %236 = arith.negf %235 : vector<8x128xf32>
    %237 = math.exp %236 : vector<8x128xf32>
    %cst_73 = arith.constant 1.000000e+00 : f32
    %238 = vector.broadcast %cst_73 : f32 to vector<8x128xf32>
    %239 = arith.addf %238, %237 : vector<8x128xf32>
    %240 = arith.divf %238, %239 : vector<8x128xf32>
    %241 = vector.extract_strided_slice %232 {offsets = [0, 128], sizes = [8, 128], strides = [1, 1]} : vector<8x256xf32> to vector<8x128xf32>
    %cst_74 = arith.constant dense<0.000000e+00> : vector<8x128xf32>
    %242 = tpu.matmul %230, %11, %cst_74 {dimension_numbers = #tpu.dot_dimension_numbers<[1], [0], [0], [1], [0, 0, 1, 1], [], []>} : vector<8x64xf32>, vector<64x128xf32>, vector<8x128xf32> -> vector<8x128xf32>
    %243 = arith.addf %241, %242 : vector<8x128xf32>
    %244 = arith.negf %243 : vector<8x128xf32>
    %245 = math.exp %244 : vector<8x128xf32>
    %cst_75 = arith.constant 1.000000e+00 : f32
    %246 = vector.broadcast %cst_75 : f32 to vector<8x128xf32>
    %247 = arith.addf %246, %245 : vector<8x128xf32>
    %248 = arith.divf %246, %247 : vector<8x128xf32>
    %249 = vector.extract_strided_slice %240 {offsets = [0, 0], sizes = [8, 64], strides = [1, 1]} : vector<8x128xf32> to vector<8x64xf32>
    %250 = vector.extract_strided_slice %240 {offsets = [0, 64], sizes = [8, 64], strides = [1, 1]} : vector<8x128xf32> to vector<8x64xf32>
    %251 = vector.extract_strided_slice %248 {offsets = [0, 0], sizes = [8, 64], strides = [1, 1]} : vector<8x128xf32> to vector<8x64xf32>
    %cst_76 = arith.constant 2.000000e+00 : f32
    %252 = vector.broadcast %cst_76 : f32 to vector<8x64xf32>
    %253 = arith.mulf %252, %251 : vector<8x64xf32>
    %cst_77 = arith.constant 1.000000e+00 : f32
    %254 = vector.broadcast %cst_77 : f32 to vector<8x64xf32>
    %255 = arith.subf %253, %254 : vector<8x64xf32>
    %256 = vector.extract_strided_slice %248 {offsets = [0, 64], sizes = [8, 64], strides = [1, 1]} : vector<8x128xf32> to vector<8x64xf32>
    %257 = arith.mulf %250, %228 : vector<8x64xf32>
    %258 = arith.mulf %249, %255 : vector<8x64xf32>
    %259 = arith.addf %257, %258 : vector<8x64xf32>
    %260 = math.tanh %259 : vector<8x64xf32>
    %261 = arith.mulf %256, %260 : vector<8x64xf32>
    %c0_78 = arith.constant 0 : index
    %c0_79 = arith.constant 0 : index
    %262 = vector.load %arg5[%c0_78, %c0_79] : memref<64x128xf32, #tpu.memory_space<vmem>>, vector<64x128xf32>
    %cst_80 = arith.constant dense<0.000000e+00> : vector<8x128xf32>
    %263 = tpu.matmul %261, %262, %cst_80 {dimension_numbers = #tpu.dot_dimension_numbers<[1], [0], [0], [1], [0, 0, 1, 1], [], []>} : vector<8x64xf32>, vector<64x128xf32>, vector<8x128xf32> -> vector<8x128xf32>
    %c0_81 = arith.constant 0 : index
    %c0_82 = arith.constant 0 : index
    %264 = vector.load %arg6[%c0_81, %c0_82] : memref<1x128xf32, #tpu.memory_space<vmem>>, vector<1x128xf32>
    %265 = vector.broadcast %264 : vector<1x128xf32> to vector<8x128xf32>
    %266 = arith.addf %263, %265 : vector<8x128xf32>
    %c0_83 = arith.constant 0 : index
    %c0_84 = arith.constant 0 : index
    %267 = vector.load %arg7[%c0_83, %c0_84] : memref<8x128xf32, #tpu.memory_space<vmem>>, vector<8x128xf32>
    tpu.vector_store %arg7[%c0_83, %c0_84], %266 {strides = array<i32>} : memref<8x128xf32, #tpu.memory_space<vmem>>, vector<8x128xf32>,
    return
  }
  func.func @transform_0(%arg0: i32) -> (i32, i32, i32) {
    %c0_i32 = arith.constant 0 : i32
    %c0_i32_0 = arith.constant 0 : i32
    %c0_i32_1 = arith.constant 0 : i32
    return %c0_i32, %arg0, %c0_i32_0 : i32, i32, i32
  }
  func.func @transform_1(%arg0: i32) -> (i32, i32) {
    %c0_i32 = arith.constant 0 : i32
    %c0_i32_0 = arith.constant 0 : i32
    %c0_i32_1 = arith.constant 0 : i32
    return %c0_i32, %c0_i32_0 : i32, i32
  }
  func.func @transform_2(%arg0: i32) -> (i32, i32) {
    %c0_i32 = arith.constant 0 : i32
    %c0_i32_0 = arith.constant 0 : i32
    %c0_i32_1 = arith.constant 0 : i32
    return %c0_i32, %c0_i32_0 : i32, i32
  }
  func.func @transform_3(%arg0: i32) -> (i32, i32) {
    %c0_i32 = arith.constant 0 : i32
    %c0_i32_0 = arith.constant 0 : i32
    %c0_i32_1 = arith.constant 0 : i32
    return %c0_i32, %c0_i32_0 : i32, i32
  }
  func.func @transform_4(%arg0: i32) -> (i32, i32) {
    %c0_i32 = arith.constant 0 : i32
    %c0_i32_0 = arith.constant 0 : i32
    %c0_i32_1 = arith.constant 0 : i32
    return %c0_i32, %c0_i32_0 : i32, i32
  }
  func.func @transform_5(%arg0: i32) -> (i32, i32) {
    %c0_i32 = arith.constant 0 : i32
    %c0_i32_0 = arith.constant 0 : i32
    %c0_i32_1 = arith.constant 0 : i32
    return %c0_i32, %c0_i32_0 : i32, i32
  }
  func.func @transform_6(%arg0: i32) -> (i32, i32) {
    %c0_i32 = arith.constant 0 : i32
    %c0_i32_0 = arith.constant 0 : i32
    return %arg0, %c0_i32 : i32, i32
  }
}

</mosaic_0001>

<llo_original>
// kernel: tpu_custom_call.1
$region0: #{tpu_custom_call.1}
  #allocation0 [shape = 'u32[]', space=smem, size = 0x4, offset = 0x4, fixed_abs, tag = 'smem constant byte address 0x4 - core index']
  #allocation1 [shape = 'u32[144,128]{1,0:T(1,128)}', space=vmem, size = 0x12000, scoped, tag = 'internal scratch']
  #allocation2 [shape = 'f32[8,8,256]{2,1,0:T(8,128)}', space=vmem, size = 0x10000, scoped, tag = 'scratch operand']
  %s0 = inlined_call_operand.hbm [shape: f32[8,8,64], index: 0, kind: input, shape index: {}]
  %s1 = inlined_call_operand.hbm [shape: f32[64,256], index: 1, kind: input, shape index: {}]
  %s2 = inlined_call_operand.hbm [shape: f32[64,256], index: 2, kind: input, shape index: {}]
  %s3 = inlined_call_operand.vmem [shape: f32[1,256], index: 3, kind: input, shape index: {}]
  %s4 = inlined_call_operand.hbm [shape: f32[64,128], index: 4, kind: input, shape index: {}]
  %s5 = inlined_call_operand.vmem [shape: f32[1,128], index: 5, kind: input, shape index: {}]
  %s6 = inlined_call_operand.hbm [shape: f32[8,128], index: 6, kind: output, shape index: {}]
  %s7 = sld [smem:[#allocation0]]
  $region50: #{tpu_custom_call.1} parent=0
    _
  %s9 = ssub.s32 1, %s7
  %s10 = scalar_select 0, %s9, %s7
  $region1: #{tpu_custom_call.1} parent=0
    #allocation3 [shape = 'u8[32768]{0}', space=vmem, size = 0x8000, scoped, tag = 'input window, operand 0, single buffered']
    #allocation4 [shape = 's32[1]{0}', space=sflag, size = 0x4, scoped, tag = 'scoped memory for tpu_custom_call.1']
    #allocation5 [shape = 's32[1]{0}', space=sflag, size = 0x4, scoped, tag = 'scoped memory for tpu_custom_call.1']
    #allocation6 [shape = 'u8[65536]{0}', space=vmem, size = 0x10000, scoped, tag = 'input window, operand 1, single buffered']
    #allocation7 [shape = 's32[1]{0}', space=sflag, size = 0x4, scoped, tag = 'scoped memory for tpu_custom_call.1']
    #allocation8 [shape = 'u8[65536]{0}', space=vmem, size = 0x10000, scoped, tag = 'input window, operand 2, single buffered']
    #allocation9 [shape = 'u8[32768]{0}', space=vmem, size = 0x8000, scoped, tag = 'input window, operand 4, single buffered']
    #allocation10 [shape = 's32[1]{0}', space=sflag, size = 0x4, scoped, tag = 'scoped memory for tpu_custom_call.1']
    #allocation11 [shape = 'u8[4096]{0}', space=vmem, size = 0x1000, scoped, tag = 'output window, operand 0, single buffered']
    %11 = vsyncpa [#allocation4], 0
    %12 = vsyncpa [#allocation7], 0
    %13 = vsyncpa [#allocation10], 0
    %14 = vsyncpa [#allocation5], 0
    // Predicated region
    $region2: #{tpu_custom_call.1} parent=1 // pred_check
      _
    $region3: #{tpu_custom_call.1} parent=1 // pred_check_branch
      %16 = sbr.rel (0) target = $region5
    $region4: #{tpu_custom_call.1} parent=1 // pred_region
      %s18 = ssub.s32 1024, 1024
      %19 = vsyncadd [#allocation4], %s18
      %s20 = sshll.u32 [#allocation3], 4
      %s21 = int_to_ptr.vmem [resolvable:$true] %s20
      %26 = dma.hbm_to_vmem [thread:$0]  %s0, 1024, %s21, [#allocation4], 128, 128, 8
    $region5: #{tpu_custom_call.1} parent=1 // pred_fallthru
      _
    // Predicated region
    $region6: #{tpu_custom_call.1} parent=1 // pred_check
      _
    $region7: #{tpu_custom_call.1} parent=1 // pred_check_branch
      %28 = sbr.rel (0) target = $region9
    $region8: #{tpu_custom_call.1} parent=1 // pred_region
      %s30 = ssub.s32 2048, 2048
      %31 = vsyncadd [#allocation7], %s30
      %s32 = sshll.u32 [#allocation6], 4
      %s33 = int_to_ptr.vmem [resolvable:$true] %s32
      %38 = dma.hbm_to_vmem [thread:$0]  %s1, 2048, %s33, [#allocation7], 256, 256, 16
    $region9: #{tpu_custom_call.1} parent=1 // pred_fallthru
      _
    // Predicated region
    $region10: #{tpu_custom_call.1} parent=1 // pred_check
      _
    $region11: #{tpu_custom_call.1} parent=1 // pred_check_branch
      %40 = sbr.rel (0) target = $region13
    $region12: #{tpu_custom_call.1} parent=1 // pred_region
      %s42 = ssub.s32 2048, 2048
      %43 = vsyncadd [#allocation7], %s42
      %s44 = sshll.u32 [#allocation8], 4
      %s45 = int_to_ptr.vmem [resolvable:$true] %s44
      %50 = dma.hbm_to_vmem [thread:$0]  %s2, 2048, %s45, [#allocation7], 256, 256, 16
    $region13: #{tpu_custom_call.1} parent=1 // pred_fallthru
      _
    // Predicated region
    $region14: #{tpu_custom_call.1} parent=1 // pred_check
      _
    $region15: #{tpu_custom_call.1} parent=1 // pred_check_branch
      %52 = sbr.rel (0) target = $region17
    $region16: #{tpu_custom_call.1} parent=1 // pred_region
      _
    $region17: #{tpu_custom_call.1} parent=1 // pred_fallthru
      _
    // Predicated region
    $region18: #{tpu_custom_call.1} parent=1 // pred_check
      _
    $region19: #{tpu_custom_call.1} parent=1 // pred_check_branch
      %54 = sbr.rel (0) target = $region21
    $region20: #{tpu_custom_call.1} parent=1 // pred_region
      %s56 = ssub.s32 1024, 1024
      %57 = vsyncadd [#allocation10], %s56
      %s58 = sshll.u32 [#allocation9], 4
      %s59 = int_to_ptr.vmem [resolvable:$true] %s58
      %64 = dma.hbm_to_vmem [thread:$0]  %s4, 1024, %s59, [#allocation10], 128, 128, 8
    $region21: #{tpu_custom_call.1} parent=1 // pred_fallthru
      _
    // Predicated region
    $region22: #{tpu_custom_call.1} parent=1 // pred_check
      _
    $region23: #{tpu_custom_call.1} parent=1 // pred_check_branch
      %66 = sbr.rel (0) target = $region25
    $region24: #{tpu_custom_call.1} parent=1 // pred_region
      _
    $region25: #{tpu_custom_call.1} parent=1 // pred_fallthru
      _
    // Predicated region
    $region26: #{tpu_custom_call.1} parent=1 // pred_check
      _
    $region27: #{tpu_custom_call.1} parent=1 // pred_check_branch
      %68 = sbr.rel (0) target = $region29
    $region28: #{tpu_custom_call.1} parent=1 // pred_region
      %69 = dma.done [#allocation4], 1024
    $region29: #{tpu_custom_call.1} parent=1 // pred_fallthru
      _
    // Predicated region
    $region30: #{tpu_custom_call.1} parent=1 // pred_check
      _
    $region31: #{tpu_custom_call.1} parent=1 // pred_check_branch
      %71 = sbr.rel (0) target = $region33
    $region32: #{tpu_custom_call.1} parent=1 // pred_region
      %72 = dma.done [#allocation7], 2048
    $region33: #{tpu_custom_call.1} parent=1 // pred_fallthru
      _
    // Predicated region
    $region34: #{tpu_custom_call.1} parent=1 // pred_check
      _
    $region35: #{tpu_custom_call.1} parent=1 // pred_check_branch
      %74 = sbr.rel (0) target = $region37
    $region36: #{tpu_custom_call.1} parent=1 // pred_region
      %75 = dma.done [#allocation7], 2048
    $region37: #{tpu_custom_call.1} parent=1 // pred_fallthru
      _
    // Predicated region
    $region38: #{tpu_custom_call.1} parent=1 // pred_check
      _
    $region39: #{tpu_custom_call.1} parent=1 // pred_check_branch
      %77 = sbr.rel (0) target = $region41
    $region40: #{tpu_custom_call.1} parent=1 // pred_region
      %78 = dma.done [#allocation10], 1024
    $region41: #{tpu_custom_call.1} parent=1 // pred_fallthru
      _
    %v79 = vld [vmem:[#allocation3] sm:$0xff]
    %v80 = vld [vmem:[#allocation3 + $0x8] sm:$0xff]
    %v81 = vld [vmem:[#allocation3 + $0x10] sm:$0xff]
    %v82 = vld [vmem:[#allocation3 + $0x18] sm:$0xff]
    %v83 = vld [vmem:[#allocation3 + $0x20] sm:$0xff]
    %v84 = vld [vmem:[#allocation3 + $0x28] sm:$0xff]
    %v85 = vld [vmem:[#allocation3 + $0x30] sm:$0xff]
    %v86 = vld [vmem:[#allocation3 + $0x38] sm:$0xff]
    %v87 = vld [vmem:[#allocation6] sm:$0xff]
    %v88 = vld [vmem:[#allocation6 + $0x8] sm:$0xff]
    %v89 = vld [vmem:[#allocation6 + $0x10] sm:$0xff]
    %v90 = vld [vmem:[#allocation6 + $0x18] sm:$0xff]
    %v91 = vld [vmem:[#allocation6 + $0x20] sm:$0xff]
    %v92 = vld [vmem:[#allocation6 + $0x28] sm:$0xff]
    %v93 = vld [vmem:[#allocation6 + $0x30] sm:$0xff]
    %v94 = vld [vmem:[#allocation6 + $0x38] sm:$0xff]
    %v95 = vld [vmem:[#allocation6 + $0x40] sm:$0xff]
    %v96 = vld [vmem:[#allocation6 + $0x48] sm:$0xff]
    %v97 = vld [vmem:[#allocation6 + $0x50] sm:$0xff]
    %v98 = vld [vmem:[#allocation6 + $0x58] sm:$0xff]
    %v99 = vld [vmem:[#allocation6 + $0x60] sm:$0xff]
    %v100 = vld [vmem:[#allocation6 + $0x68] sm:$0xff]
    %v101 = vld [vmem:[#allocation6 + $0x70] sm:$0xff]
    %v102 = vld [vmem:[#allocation6 + $0x78] sm:$0xff]
    %v103 = vld [vmem:[%s3] sm:$0x3]
    %v105 = vlaneseq
    %v106 = vshrl.u32 %v105, 7
    %v107 = vsub.s32 0, %v106
    %v108 = vrot.slane %v103, %v107
    %v109 = vlaneseq
    %v110 = vshrl.u32 %v109, 7
    %v111 = vsub.s32 1, %v110
    %v112 = vrot.slane %v103, %v111
    %vm115 = vcmask 523264
    %v117 = vsel %vm115, %v79, 0
    %v120 = vsel %vm115, %v80, 0
    %v123 = vsel %vm115, %v81, 0
    %v126 = vsel %vm115, %v82, 0
    %v129 = vsel %vm115, %v83, 0
    %v132 = vsel %vm115, %v84, 0
    %v135 = vsel %vm115, %v85, 0
    %v138 = vsel %vm115, %v86, 0
    %140 = vmatprep.subr.mxu0 0.0
    %141 = vmatpush1.msra.mxu0 0.0
    %142 = vmatprep.subr.mxu0 0.0
    %143 = vmatpush1.msra.mxu0 0.0
    %144 = vmatprep.subr.mxu0 0.0
    %145 = vmatpush1.msra.mxu0 0.0
    %146 = vmatprep.subr.mxu0 0.0
    %147 = vmatpush1.msra.mxu0 0.0
    %148 = vmatprep.subr.mxu0 0.0
    %149 = vmatpush1.msra.mxu0 0.0
    %150 = vmatprep.subr.mxu0 0.0
    %151 = vmatpush1.msra.mxu0 0.0
    %152 = vmatprep.subr.mxu0 0.0
    %153 = vmatpush1.msra.mxu0 0.0
    %154 = vmatprep.subr.mxu0 0.0
    %155 = vmatpush1.msra.mxu0 0.0
    %156 = vmatprep.subr.mxu0 %v102
    %157 = vmatpush1.msra.mxu0 %v101
    %158 = vmatprep.subr.mxu0 %v100
    %159 = vmatpush1.msra.mxu0 %v99
    %160 = vmatprep.subr.mxu0 %v98
    %161 = vmatpush1.msra.mxu0 %v97
    %162 = vmatprep.subr.mxu0 %v96
    %163 = vmatpush1.msra.mxu0 %v95
    %164 = vmatprep.subr.mxu0 %v94
    %165 = vmatpush1.msra.mxu0 %v93
    %166 = vmatprep.subr.mxu0 %v92
    %167 = vmatpush1.msra.mxu0 %v91
    %168 = vmatprep.subr.mxu0 %v90
    %169 = vmatpush1.msra.mxu0 %v89
    %170 = vmatprep.subr.mxu0 %v88
    %171 = vmatpush1.msra.mxu0 %v87
    %172 = vmatprep.subr.mxu0 0.0
    %173 = vmatpush2.msra.mxu0 0.0
    %174 = vmatprep.subr.mxu0 0.0
    %175 = vmatpush2.msra.mxu0 0.0
    %176 = vmatprep.subr.mxu0 0.0
    %177 = vmatpush2.msra.mxu0 0.0
    %178 = vmatprep.subr.mxu0 0.0
    %179 = vmatpush2.msra.mxu0 0.0
    %180 = vmatprep.subr.mxu0 0.0
    %181 = vmatpush2.msra.mxu0 0.0
    %182 = vmatprep.subr.mxu0 0.0
    %183 = vmatpush2.msra.mxu0 0.0
    %184 = vmatprep.subr.mxu0 0.0
    %185 = vmatpush2.msra.mxu0 0.0
    %186 = vmatprep.subr.mxu0 0.0
    %187 = vmatpush2.msra.mxu0 0.0
    %188 = vmatprep.subr.mxu0 0.0
    %189 = vmatpush2.msra.mxu0 0.0
    %190 = vmatprep.subr.mxu0 0.0
    %191 = vmatpush2.msra.mxu0 0.0
    %192 = vmatprep.subr.mxu0 0.0
    %193 = vmatpush2.msra.mxu0 0.0
    %194 = vmatprep.subr.mxu0 0.0
    %195 = vmatpush2.msra.mxu0 0.0
    %196 = vmatprep.subr.mxu0 0.0
    %197 = vmatpush2.msra.mxu0 0.0
    %198 = vmatprep.subr.mxu0 0.0
    %199 = vmatpush2.msra.mxu0 0.0
    %200 = vmatprep.subr.mxu0 0.0
    %201 = vmatpush2.msra.mxu0 0.0
    %202 = vmatprep.subr.mxu0 0.0
    %203 = vmatpush2.msra.mxu0 0.0
    %204 = vmatprep.mubr.f32.mxu0 0.0
    %205 = vmatmul.mubr.f32.gmra.mxu0 %v117
    %v206 = vpop.f32.mrf.mxu0
    %v207 = vadd.f32 %v108, %v206
    %v208 = vpop.f32.mrf.mxu0
    %v209 = vadd.f32 %v112, %v208
    %210 = vmatprep.mubr.f32.mxu0 0.0
    %211 = vmatmul.mubr.f32.gmra.mxu0 %v120
    %v212 = vpop.f32.mrf.mxu0
    %v213 = vadd.f32 %v108, %v212
    %v214 = vpop.f32.mrf.mxu0
    %v215 = vadd.f32 %v112, %v214
    %216 = vmatprep.mubr.f32.mxu0 0.0
    %217 = vmatmul.mubr.f32.gmra.mxu0 %v123
    %v218 = vpop.f32.mrf.mxu0
    %v219 = vadd.f32 %v108, %v218
    %v220 = vpop.f32.mrf.mxu0
    %v221 = vadd.f32 %v112, %v220
    %222 = vmatprep.mubr.f32.mxu0 0.0
    %223 = vmatmul.mubr.f32.gmra.mxu0 %v126
    %v224 = vpop.f32.mrf.mxu0
    %v225 = vadd.f32 %v108, %v224
    %v226 = vpop.f32.mrf.mxu0
    %v227 = vadd.f32 %v112, %v226
    %228 = vmatprep.mubr.f32.mxu0 0.0
    %229 = vmatmul.mubr.f32.gmra.mxu0 %v129
    %v230 = vpop.f32.mrf.mxu0
    %v231 = vadd.f32 %v108, %v230
    %v232 = vpop.f32.mrf.mxu0
    %v233 = vadd.f32 %v112, %v232
    %234 = vmatprep.mubr.f32.mxu0 0.0
    %235 = vmatmul.mubr.f32.gmra.mxu0 %v132
    %v236 = vpop.f32.mrf.mxu0
    %v237 = vadd.f32 %v108, %v236
    %v238 = vpop.f32.mrf.mxu0
    %v239 = vadd.f32 %v112, %v238
    %240 = vmatprep.mubr.f32.mxu0 0.0
    %241 = vmatmul.mubr.f32.gmra.mxu0 %v135
    %v242 = vpop.f32.mrf.mxu0
    %v243 = vadd.f32 %v108, %v242
    %v244 = vpop.f32.mrf.mxu0
    %v245 = vadd.f32 %v112, %v244
    %246 = vmatprep.mubr.f32.mxu0 0.0
    %247 = vmatmul.mubr.f32.gmra.mxu0 %v138
    %v248 = vpop.f32.mrf.mxu0
    %v249 = vadd.f32 %v108, %v248
    %v250 = vpop.f32.mrf.mxu0
    %v251 = vadd.f32 %v112, %v250
    %252 = vdwg.mxu0
    %253 = vst [vmem:[#allocation2] sm:$0xff] %v207
    %254 = vst [vmem:[#allocation2 + $0x8] sm:$0xff] %v209
    %255 = vst [vmem:[#allocation2 + $0x10] sm:$0xff] %v213
    %256 = vst [vmem:[#allocation2 + $0x18] sm:$0xff] %v215
    %257 = vst [vmem:[#allocation2 + $0x20] sm:$0xff] %v219
    %258 = vst [vmem:[#allocation2 + $0x28] sm:$0xff] %v221
    %259 = vst [vmem:[#allocation2 + $0x30] sm:$0xff] %v225
    %260 = vst [vmem:[#allocation2 + $0x38] sm:$0xff] %v227
    %261 = vst [vmem:[#allocation2 + $0x40] sm:$0xff] %v231
    %262 = vst [vmem:[#allocation2 + $0x48] sm:$0xff] %v233
    %263 = vst [vmem:[#allocation2 + $0x50] sm:$0xff] %v237
    %264 = vst [vmem:[#allocation2 + $0x58] sm:$0xff] %v239
    %265 = vst [vmem:[#allocation2 + $0x60] sm:$0xff] %v243
    %266 = vst [vmem:[#allocation2 + $0x68] sm:$0xff] %v245
    %267 = vst [vmem:[#allocation2 + $0x70] sm:$0xff] %v249
    %268 = vst [vmem:[#allocation2 + $0x78] sm:$0xff] %v251
    %v269 = vld [vmem:[#allocation8] sm:$0xff]
    %v270 = vld [vmem:[#allocation8 + $0x8] sm:$0xff]
    %v271 = vld [vmem:[#allocation8 + $0x10] sm:$0xff]
    %v272 = vld [vmem:[#allocation8 + $0x18] sm:$0xff]
    %v273 = vld [vmem:[#allocation8 + $0x20] sm:$0xff]
    %v274 = vld [vmem:[#allocation8 + $0x28] sm:$0xff]
    %v275 = vld [vmem:[#allocation8 + $0x30] sm:$0xff]
    %v276 = vld [vmem:[#allocation8 + $0x38] sm:$0xff]
    %v277 = vld [vmem:[#allocation8 + $0x40] sm:$0xff]
    %v278 = vld [vmem:[#allocation8 + $0x48] sm:$0xff]
    %v279 = vld [vmem:[#allocation8 + $0x50] sm:$0xff]
    %v280 = vld [vmem:[#allocation8 + $0x58] sm:$0xff]
    %v281 = vld [vmem:[#allocation8 + $0x60] sm:$0xff]
    %v282 = vld [vmem:[#allocation8 + $0x68] sm:$0xff]
    %v283 = vld [vmem:[#allocation8 + $0x70] sm:$0xff]
    %v284 = vld [vmem:[#allocation8 + $0x78] sm:$0xff]
    %v285 = vld [vmem:[#allocation2] sm:$0xff]
    %v286 = vld [vmem:[#allocation2 + $0x8] sm:$0xff]
    %v288 = vsel %vm115, 0.0, 0
    %290 = vmatprep.subr.mxu0 0.0
    %291 = vmatpush1.msra.mxu0 0.0
    %292 = vmatprep.subr.mxu0 0.0
    %293 = vmatpush1.msra.mxu0 0.0
    %294 = vmatprep.subr.mxu0 0.0
    %295 = vmatpush1.msra.mxu0 0.0
    %296 = vmatprep.subr.mxu0 0.0
    %297 = vmatpush1.msra.mxu0 0.0
    %298 = vmatprep.subr.mxu0 0.0
    %299 = vmatpush1.msra.mxu0 0.0
    %300 = vmatprep.subr.mxu0 0.0
    %301 = vmatpush1.msra.mxu0 0.0
    %302 = vmatprep.subr.mxu0 0.0
    %303 = vmatpush1.msra.mxu0 0.0
    %304 = vmatprep.subr.mxu0 0.0
    %305 = vmatpush1.msra.mxu0 0.0
    %306 = vmatprep.subr.mxu0 0.0
    %307 = vmatpush1.msra.mxu0 %v283
    %308 = vmatprep.subr.mxu0 0.0
    %309 = vmatpush1.msra.mxu0 %v281
    %310 = vmatprep.subr.mxu0 0.0
    %311 = vmatpush1.msra.mxu0 %v279
    %312 = vmatprep.subr.mxu0 0.0
    %313 = vmatpush1.msra.mxu0 %v277
    %314 = vmatprep.subr.mxu0 0.0
    %315 = vmatpush1.msra.mxu0 %v275
    %316 = vmatprep.subr.mxu0 0.0
    %317 = vmatpush1.msra.mxu0 %v273
    %318 = vmatprep.subr.mxu0 0.0
    %319 = vmatpush1.msra.mxu0 %v271
    %320 = vmatprep.subr.mxu0 0.0
    %321 = vmatpush1.msra.mxu0 %v269
    %322 = vmatprep.subr.mxu0 0.0
    %323 = vmatpush2.msra.mxu0 0.0
    %324 = vmatprep.subr.mxu0 0.0
    %325 = vmatpush2.msra.mxu0 0.0
    %326 = vmatprep.subr.mxu0 0.0
    %327 = vmatpush2.msra.mxu0 0.0
    %328 = vmatprep.subr.mxu0 0.0
    %329 = vmatpush2.msra.mxu0 0.0
    %330 = vmatprep.subr.mxu0 0.0
    %331 = vmatpush2.msra.mxu0 0.0
    %332 = vmatprep.subr.mxu0 0.0
    %333 = vmatpush2.msra.mxu0 0.0
    %334 = vmatprep.subr.mxu0 0.0
    %335 = vmatpush2.msra.mxu0 0.0
    %336 = vmatprep.subr.mxu0 0.0
    %337 = vmatpush2.msra.mxu0 0.0
    %338 = vmatprep.subr.mxu0 0.0
    %339 = vmatpush2.msra.mxu0 0.0
    %340 = vmatprep.subr.mxu0 0.0
    %341 = vmatpush2.msra.mxu0 0.0
    %342 = vmatprep.subr.mxu0 0.0
    %343 = vmatpush2.msra.mxu0 0.0
    %344 = vmatprep.subr.mxu0 0.0
    %345 = vmatpush2.msra.mxu0 0.0
    %346 = vmatprep.subr.mxu0 0.0
    %347 = vmatpush2.msra.mxu0 0.0
    %348 = vmatprep.subr.mxu0 0.0
    %349 = vmatpush2.msra.mxu0 0.0
    %350 = vmatprep.subr.mxu0 0.0
    %351 = vmatpush2.msra.mxu0 0.0
    %352 = vmatprep.subr.mxu0 0.0
    %353 = vmatpush2.msra.mxu0 0.0
    %354 = vmatprep.mubr.f32.mxu0 0.0
    %355 = vmatmul.mubr.f32.gmra.mxu0 %v288
    %v356 = vpop.f32.mrf.mxu0
    %v357 = vadd.f32 0.0, %v356
    %v358 = vpop.f32.mrf.mxu0
    %359 = vdwg.mxu0
    %v360 = vadd.f32 %v285, %v357
    %v361 = vxor.u32 %v360, 2147483648
    %v362 = vmul.f32 %v361, 1.442695
    %v363 = vpow.pop %v362
    %v364 = vadd.f32 %v363, 1.0
    %v365 = vrcp.pop %v364
    %v366 = vmul.f32 1.0, %v365
    %367 = vmatprep.subr.mxu0 0.0
    %368 = vmatpush1.msra.mxu0 0.0
    %369 = vmatprep.subr.mxu0 0.0
    %370 = vmatpush1.msra.mxu0 0.0
    %371 = vmatprep.subr.mxu0 0.0
    %372 = vmatpush1.msra.mxu0 0.0
    %373 = vmatprep.subr.mxu0 0.0
    %374 = vmatpush1.msra.mxu0 0.0
    %375 = vmatprep.subr.mxu0 0.0
    %376 = vmatpush1.msra.mxu0 0.0
    %377 = vmatprep.subr.mxu0 0.0
    %378 = vmatpush1.msra.mxu0 0.0
    %379 = vmatprep.subr.mxu0 0.0
    %380 = vmatpush1.msra.mxu0 0.0
    %381 = vmatprep.subr.mxu0 0.0
    %382 = vmatpush1.msra.mxu0 0.0
    %383 = vmatprep.subr.mxu0 0.0
    %384 = vmatpush1.msra.mxu0 %v284
    %385 = vmatprep.subr.mxu0 0.0
    %386 = vmatpush1.msra.mxu0 %v282
    %387 = vmatprep.subr.mxu0 0.0
    %388 = vmatpush1.msra.mxu0 %v280
    %389 = vmatprep.subr.mxu0 0.0
    %390 = vmatpush1.msra.mxu0 %v278
    %391 = vmatprep.subr.mxu0 0.0
    %392 = vmatpush1.msra.mxu0 %v276
    %393 = vmatprep.subr.mxu0 0.0
    %394 = vmatpush1.msra.mxu0 %v274
    %395 = vmatprep.subr.mxu0 0.0
    %396 = vmatpush1.msra.mxu0 %v272
    %397 = vmatprep.subr.mxu0 0.0
    %398 = vmatpush1.msra.mxu0 %v270
    %399 = vmatprep.subr.mxu0 0.0
    %400 = vmatpush2.msra.mxu0 0.0
    %401 = vmatprep.subr.mxu0 0.0
    %402 = vmatpush2.msra.mxu0 0.0
    %403 = vmatprep.subr.mxu0 0.0
    %404 = vmatpush2.msra.mxu0 0.0
    %405 = vmatprep.subr.mxu0 0.0
    %406 = vmatpush2.msra.mxu0 0.0
    %407 = vmatprep.subr.mxu0 0.0
    %408 = vmatpush2.msra.mxu0 0.0
    %409 = vmatprep.subr.mxu0 0.0
    %410 = vmatpush2.msra.mxu0 0.0
    %411 = vmatprep.subr.mxu0 0.0
    %412 = vmatpush2.msra.mxu0 0.0
    %413 = vmatprep.subr.mxu0 0.0
    %414 = vmatpush2.msra.mxu0 0.0
    %415 = vmatprep.subr.mxu0 0.0
    %416 = vmatpush2.msra.mxu0 0.0
    %417 = vmatprep.subr.mxu0 0.0
    %418 = vmatpush2.msra.mxu0 0.0
    %419 = vmatprep.subr.mxu0 0.0
    %420 = vmatpush2.msra.mxu0 0.0
    %421 = vmatprep.subr.mxu0 0.0
    %422 = vmatpush2.msra.mxu0 0.0
    %423 = vmatprep.subr.mxu0 0.0
    %424 = vmatpush2.msra.mxu0 0.0
    %425 = vmatprep.subr.mxu0 0.0
    %426 = vmatpush2.msra.mxu0 0.0
    %427 = vmatprep.subr.mxu0 0.0
    %428 = vmatpush2.msra.mxu0 0.0
    %429 = vmatprep.subr.mxu0 0.0
    %430 = vmatpush2.msra.mxu0 0.0
    %431 = vmatprep.mubr.f32.mxu0 0.0
    %432 = vmatmul.mubr.f32.gmra.mxu0 %v288
    %v433 = vpop.f32.mrf.mxu0
    %v434 = vadd.f32 0.0, %v433
    %v435 = vpop.f32.mrf.mxu0
    %436 = vdwg.mxu0
    %v437 = vadd.f32 %v286, %v434
    %v438 = vxor.u32 %v437, 2147483648
    %v439 = vmul.f32 %v438, 1.442695
    %v440 = vpow.pop %v439
    %v441 = vadd.f32 %v440, 1.0
    %v442 = vrcp.pop %v441
    %v443 = vmul.f32 1.0, %v442
    %v444 = vmul.f32 %v443, 2.0
    %v445 = vsub.f32 %v444, 1.0
    %v446 = vmul.f32 %v366, 0.0
    %v447 = vmul.f32 %v366, %v445
    %449 = vrot.lane.b32.xlu0 %v447, 64
    %v450 = vpop.permute.xlu0 %449
    %v452 = vadd.f32 %v446, %v450
    %v453 = vtanh.pop %v452
    %v454 = vmul.f32 %v443, %v453
    %s455 = scalar_lea.vmem [#allocation2], 16
    %v456 = vld [vmem:[%s455] sm:$0xff]
    %v457 = vld [vmem:[%s455 + $0x8] sm:$0xff]
    %459 = vrot.lane.b32.xlu0 %v454, 64
    %v460 = vpop.permute.xlu0 %459
    %v461 = vsel %vm115, %v460, 0
    %463 = vmatprep.subr.mxu0 0.0
    %464 = vmatpush1.msra.mxu0 0.0
    %465 = vmatprep.subr.mxu0 0.0
    %466 = vmatpush1.msra.mxu0 0.0
    %467 = vmatprep.subr.mxu0 0.0
    %468 = vmatpush1.msra.mxu0 0.0
    %469 = vmatprep.subr.mxu0 0.0
    %470 = vmatpush1.msra.mxu0 0.0
    %471 = vmatprep.subr.mxu0 0.0
    %472 = vmatpush1.msra.mxu0 0.0
    %473 = vmatprep.subr.mxu0 0.0
    %474 = vmatpush1.msra.mxu0 0.0
    %475 = vmatprep.subr.mxu0 0.0
    %476 = vmatpush1.msra.mxu0 0.0
    %477 = vmatprep.subr.mxu0 0.0
    %478 = vmatpush1.msra.mxu0 0.0
    %479 = vmatprep.subr.mxu0 0.0
    %480 = vmatpush1.msra.mxu0 %v283
    %481 = vmatprep.subr.mxu0 0.0
    %482 = vmatpush1.msra.mxu0 %v281
    %483 = vmatprep.subr.mxu0 0.0
    %484 = vmatpush1.msra.mxu0 %v279
    %485 = vmatprep.subr.mxu0 0.0
    %486 = vmatpush1.msra.mxu0 %v277
    %487 = vmatprep.subr.mxu0 0.0
    %488 = vmatpush1.msra.mxu0 %v275
    %489 = vmatprep.subr.mxu0 0.0
    %490 = vmatpush1.msra.mxu0 %v273
    %491 = vmatprep.subr.mxu0 0.0
    %492 = vmatpush1.msra.mxu0 %v271
    %493 = vmatprep.subr.mxu0 0.0
    %494 = vmatpush1.msra.mxu0 %v269
    %495 = vmatprep.subr.mxu0 0.0
    %496 = vmatpush2.msra.mxu0 0.0
    %497 = vmatprep.subr.mxu0 0.0
    %498 = vmatpush2.msra.mxu0 0.0
    %499 = vmatprep.subr.mxu0 0.0
    %500 = vmatpush2.msra.mxu0 0.0
    %501 = vmatprep.subr.mxu0 0.0
    %502 = vmatpush2.msra.mxu0 0.0
    %503 = vmatprep.subr.mxu0 0.0
    %504 = vmatpush2.msra.mxu0 0.0
    %505 = vmatprep.subr.mxu0 0.0
    %506 = vmatpush2.msra.mxu0 0.0
    %507 = vmatprep.subr.mxu0 0.0
    %508 = vmatpush2.msra.mxu0 0.0
    %509 = vmatprep.subr.mxu0 0.0
    %510 = vmatpush2.msra.mxu0 0.0
    %511 = vmatprep.subr.mxu0 0.0
    %512 = vmatpush2.msra.mxu0 0.0
    %513 = vmatprep.subr.mxu0 0.0
    %514 = vmatpush2.msra.mxu0 0.0
    %515 = vmatprep.subr.mxu0 0.0
    %516 = vmatpush2.msra.mxu0 0.0
    %517 = vmatprep.subr.mxu0 0.0
    %518 = vmatpush2.msra.mxu0 0.0
    %519 = vmatprep.subr.mxu0 0.0
    %520 = vmatpush2.msra.mxu0 0.0
    %521 = vmatprep.subr.mxu0 0.0
    %522 = vmatpush2.msra.mxu0 0.0
    %523 = vmatprep.subr.mxu0 0.0
    %524 = vmatpush2.msra.mxu0 0.0
    %525 = vmatprep.subr.mxu0 0.0
    %526 = vmatpush2.msra.mxu0 0.0
    %527 = vmatprep.mubr.f32.mxu0 0.0
    %528 = vmatmul.mubr.f32.gmra.mxu0 %v461
    %v529 = vpop.f32.mrf.mxu0
    %v530 = vadd.f32 0.0, %v529
    %v531 = vpop.f32.mrf.mxu0
    %532 = vdwg.mxu0
    %v533 = vadd.f32 %v456, %v530
    %v534 = vxor.u32 %v533, 2147483648
    %v535 = vmul.f32 %v534, 1.442695
    %v536 = vpow.pop %v535
    %v537 = vadd.f32 %v536, 1.0
    %v538 = vrcp.pop %v537
    %v539 = vmul.f32 1.0, %v538
    %540 = vmatprep.subr.mxu0 0.0
    %541 = vmatpush1.msra.mxu0 0.0
    %542 = vmatprep.subr.mxu0 0.0
    %543 = vmatpush1.msra.mxu0 0.0
    %544 = vmatprep.subr.mxu0 0.0
    %545 = vmatpush1.msra.mxu0 0.0
    %546 = vmatprep.subr.mxu0 0.0
    %547 = vmatpush1.msra.mxu0 0.0
    %548 = vmatprep.subr.mxu0 0.0
    %549 = vmatpush1.msra.mxu0 0.0
    %550 = vmatprep.subr.mxu0 0.0
    %551 = vmatpush1.msra.mxu0 0.0
    %552 = vmatprep.subr.mxu0 0.0
    %553 = vmatpush1.msra.mxu0 0.0
    %554 = vmatprep.subr.mxu0 0.0
    %555 = vmatpush1.msra.mxu0 0.0
    %556 = vmatprep.subr.mxu0 0.0
    %557 = vmatpush1.msra.mxu0 %v284
    %558 = vmatprep.subr.mxu0 0.0
    %559 = vmatpush1.msra.mxu0 %v282
    %560 = vmatprep.subr.mxu0 0.0
    %561 = vmatpush1.msra.mxu0 %v280
    %562 = vmatprep.subr.mxu0 0.0
    %563 = vmatpush1.msra.mxu0 %v278
    %564 = vmatprep.subr.mxu0 0.0
    %565 = vmatpush1.msra.mxu0 %v276
    %566 = vmatprep.subr.mxu0 0.0
    %567 = vmatpush1.msra.mxu0 %v274
    %568 = vmatprep.subr.mxu0 0.0
    %569 = vmatpush1.msra.mxu0 %v272
    %570 = vmatprep.subr.mxu0 0.0
    %571 = vmatpush1.msra.mxu0 %v270
    %572 = vmatprep.subr.mxu0 0.0
    %573 = vmatpush2.msra.mxu0 0.0
    %574 = vmatprep.subr.mxu0 0.0
    %575 = vmatpush2.msra.mxu0 0.0
    %576 = vmatprep.subr.mxu0 0.0
    %577 = vmatpush2.msra.mxu0 0.0
    %578 = vmatprep.subr.mxu0 0.0
    %579 = vmatpush2.msra.mxu0 0.0
    %580 = vmatprep.subr.mxu0 0.0
    %581 = vmatpush2.msra.mxu0 0.0
    %582 = vmatprep.subr.mxu0 0.0
    %583 = vmatpush2.msra.mxu0 0.0
    %584 = vmatprep.subr.mxu0 0.0
    %585 = vmatpush2.msra.mxu0 0.0
    %586 = vmatprep.subr.mxu0 0.0
    %587 = vmatpush2.msra.mxu0 0.0
    %588 = vmatprep.subr.mxu0 0.0
    %589 = vmatpush2.msra.mxu0 0.0
    %590 = vmatprep.subr.mxu0 0.0
    %591 = vmatpush2.msra.mxu0 0.0
    %592 = vmatprep.subr.mxu0 0.0
    %593 = vmatpush2.msra.mxu0 0.0
    %594 = vmatprep.subr.mxu0 0.0
    %595 = vmatpush2.msra.mxu0 0.0
    %596 = vmatprep.subr.mxu0 0.0
    %597 = vmatpush2.msra.mxu0 0.0
    %598 = vmatprep.subr.mxu0 0.0
    %599 = vmatpush2.msra.mxu0 0.0
    %600 = vmatprep.subr.mxu0 0.0
    %601 = vmatpush2.msra.mxu0 0.0
    %602 = vmatprep.subr.mxu0 0.0
    %603 = vmatpush2.msra.mxu0 0.0
    %604 = vmatprep.mubr.f32.mxu0 0.0
    %605 = vmatmul.mubr.f32.gmra.mxu0 %v461
    %v606 = vpop.f32.mrf.mxu0
    %v607 = vadd.f32 0.0, %v606
    %v608 = vpop.f32.mrf.mxu0
    %609 = vdwg.mxu0
    %v610 = vadd.f32 %v457, %v607
    %v611 = vxor.u32 %v610, 2147483648
    %v612 = vmul.f32 %v611, 1.442695
    %v613 = vpow.pop %v612
    %v614 = vadd.f32 %v613, 1.0
    %v615 = vrcp.pop %v614
    %v616 = vmul.f32 1.0, %v615
    %v617 = vmul.f32 %v616, 2.0
    %v618 = vsub.f32 %v617, 1.0
    %v619 = vmul.f32 %v539, %v452
    %v620 = vmul.f32 %v539, %v618
    %622 = vrot.lane.b32.xlu0 %v620, 64
    %v623 = vpop.permute.xlu0 %622
    %v625 = vadd.f32 %v619, %v623
    %v626 = vtanh.pop %v625
    %v627 = vmul.f32 %v616, %v626
    %s628 = scalar_lea.vmem [#allocation2], 32
    %v629 = vld [vmem:[%s628] sm:$0xff]
    %v630 = vld [vmem:[%s628 + $0x8] sm:$0xff]
    %632 = vrot.lane.b32.xlu0 %v627, 64
    %v633 = vpop.permute.xlu0 %632
    %v634 = vsel %vm115, %v633, 0
    %636 = vmatprep.subr.mxu0 0.0
    %637 = vmatpush1.msra.mxu0 0.0
    %638 = vmatprep.subr.mxu0 0.0
    %639 = vmatpush1.msra.mxu0 0.0
    %640 = vmatprep.subr.mxu0 0.0
    %641 = vmatpush1.msra.mxu0 0.0
    %642 = vmatprep.subr.mxu0 0.0
    %643 = vmatpush1.msra.mxu0 0.0
    %644 = vmatprep.subr.mxu0 0.0
    %645 = vmatpush1.msra.mxu0 0.0
    %646 = vmatprep.subr.mxu0 0.0
    %647 = vmatpush1.msra.mxu0 0.0
    %648 = vmatprep.subr.mxu0 0.0
    %649 = vmatpush1.msra.mxu0 0.0
    %650 = vmatprep.subr.mxu0 0.0
    %651 = vmatpush1.msra.mxu0 0.0
    %652 = vmatprep.subr.mxu0 0.0
    %653 = vmatpush1.msra.mxu0 %v283
    %654 = vmatprep.subr.mxu0 0.0
    %655 = vmatpush1.msra.mxu0 %v281
    %656 = vmatprep.subr.mxu0 0.0
    %657 = vmatpush1.msra.mxu0 %v279
    %658 = vmatprep.subr.mxu0 0.0
    %659 = vmatpush1.msra.mxu0 %v277
    %660 = vmatprep.subr.mxu0 0.0
    %661 = vmatpush1.msra.mxu0 %v275
    %662 = vmatprep.subr.mxu0 0.0
    %663 = vmatpush1.msra.mxu0 %v273
    %664 = vmatprep.subr.mxu0 0.0
    %665 = vmatpush1.msra.mxu0 %v271
    %666 = vmatprep.subr.mxu0 0.0
    %667 = vmatpush1.msra.mxu0 %v269
    %668 = vmatprep.subr.mxu0 0.0
    %669 = vmatpush2.msra.mxu0 0.0
    %670 = vmatprep.subr.mxu0 0.0
    %671 = vmatpush2.msra.mxu0 0.0
    %672 = vmatprep.subr.mxu0 0.0
    %673 = vmatpush2.msra.mxu0 0.0
    %674 = vmatprep.subr.mxu0 0.0
    %675 = vmatpush2.msra.mxu0 0.0
    %676 = vmatprep.subr.mxu0 0.0
    %677 = vmatpush2.msra.mxu0 0.0
    %678 = vmatprep.subr.mxu0 0.0
    %679 = vmatpush2.msra.mxu0 0.0
    %680 = vmatprep.subr.mxu0 0.0
    %681 = vmatpush2.msra.mxu0 0.0
    %682 = vmatprep.subr.mxu0 0.0
    %683 = vmatpush2.msra.mxu0 0.0
    %684 = vmatprep.subr.mxu0 0.0
    %685 = vmatpush2.msra.mxu0 0.0
    %686 = vmatprep.subr.mxu0 0.0
    %687 = vmatpush2.msra.mxu0 0.0
    %688 = vmatprep.subr.mxu0 0.0
    %689 = vmatpush2.msra.mxu0 0.0
    %690 = vmatprep.subr.mxu0 0.0
    %691 = vmatpush2.msra.mxu0 0.0
    %692 = vmatprep.subr.mxu0 0.0
    %693 = vmatpush2.msra.mxu0 0.0
    %694 = vmatprep.subr.mxu0 0.0
    %695 = vmatpush2.msra.mxu0 0.0
    %696 = vmatprep.subr.mxu0 0.0
    %697 = vmatpush2.msra.mxu0 0.0
    %698 = vmatprep.subr.mxu0 0.0
    %699 = vmatpush2.msra.mxu0 0.0
    %700 = vmatprep.mubr.f32.mxu0 0.0
    %701 = vmatmul.mubr.f32.gmra.mxu0 %v634
    %v702 = vpop.f32.mrf.mxu0
    %v703 = vadd.f32 0.0, %v702
    %v704 = vpop.f32.mrf.mxu0
    %705 = vdwg.mxu0
    %v706 = vadd.f32 %v629, %v703
    %v707 = vxor.u32 %v706, 2147483648
    %v708 = vmul.f32 %v707, 1.442695
    %v709 = vpow.pop %v708
    %v710 = vadd.f32 %v709, 1.0
    %v711 = vrcp.pop %v710
    %v712 = vmul.f32 1.0, %v711
    %713 = vmatprep.subr.mxu0 0.0
    %714 = vmatpush1.msra.mxu0 0.0
    %715 = vmatprep.subr.mxu0 0.0
    %716 = vmatpush1.msra.mxu0 0.0
    %717 = vmatprep.subr.mxu0 0.0
    %718 = vmatpush1.msra.mxu0 0.0
    %719 = vmatprep.subr.mxu0 0.0
    %720 = vmatpush1.msra.mxu0 0.0
    %721 = vmatprep.subr.mxu0 0.0
    %722 = vmatpush1.msra.mxu0 0.0
    %723 = vmatprep.subr.mxu0 0.0
    %724 = vmatpush1.msra.mxu0 0.0
    %725 = vmatprep.subr.mxu0 0.0
    %726 = vmatpush1.msra.mxu0 0.0
    %727 = vmatprep.subr.mxu0 0.0
    %728 = vmatpush1.msra.mxu0 0.0
    %729 = vmatprep.subr.mxu0 0.0
    %730 = vmatpush1.msra.mxu0 %v284
    %731 = vmatprep.subr.mxu0 0.0
    %732 = vmatpush1.msra.mxu0 %v282
    %733 = vmatprep.subr.mxu0 0.0
    %734 = vmatpush1.msra.mxu0 %v280
    %735 = vmatprep.subr.mxu0 0.0
    %736 = vmatpush1.msra.mxu0 %v278
    %737 = vmatprep.subr.mxu0 0.0
    %738 = vmatpush1.msra.mxu0 %v276
    %739 = vmatprep.subr.mxu0 0.0
    %740 = vmatpush1.msra.mxu0 %v274
    %741 = vmatprep.subr.mxu0 0.0
    %742 = vmatpush1.msra.mxu0 %v272
    %743 = vmatprep.subr.mxu0 0.0
    %744 = vmatpush1.msra.mxu0 %v270
    %745 = vmatprep.subr.mxu0 0.0
    %746 = vmatpush2.msra.mxu0 0.0
    %747 = vmatprep.subr.mxu0 0.0
    %748 = vmatpush2.msra.mxu0 0.0
    %749 = vmatprep.subr.mxu0 0.0
    %750 = vmatpush2.msra.mxu0 0.0
    %751 = vmatprep.subr.mxu0 0.0
    %752 = vmatpush2.msra.mxu0 0.0
    %753 = vmatprep.subr.mxu0 0.0
    %754 = vmatpush2.msra.mxu0 0.0
    %755 = vmatprep.subr.mxu0 0.0
    %756 = vmatpush2.msra.mxu0 0.0
    %757 = vmatprep.subr.mxu0 0.0
    %758 = vmatpush2.msra.mxu0 0.0
    %759 = vmatprep.subr.mxu0 0.0
    %760 = vmatpush2.msra.mxu0 0.0
    %761 = vmatprep.subr.mxu0 0.0
    %762 = vmatpush2.msra.mxu0 0.0
    %763 = vmatprep.subr.mxu0 0.0
    %764 = vmatpush2.msra.mxu0 0.0
    %765 = vmatprep.subr.mxu0 0.0
    %766 = vmatpush2.msra.mxu0 0.0
    %767 = vmatprep.subr.mxu0 0.0
    %768 = vmatpush2.msra.mxu0 0.0
    %769 = vmatprep.subr.mxu0 0.0
    %770 = vmatpush2.msra.mxu0 0.0
    %771 = vmatprep.subr.mxu0 0.0
    %772 = vmatpush2.msra.mxu0 0.0
    %773 = vmatprep.subr.mxu0 0.0
    %774 = vmatpush2.msra.mxu0 0.0
    %775 = vmatprep.subr.mxu0 0.0
    %776 = vmatpush2.msra.mxu0 0.0
    %777 = vmatprep.mubr.f32.mxu0 0.0
    %778 = vmatmul.mubr.f32.gmra.mxu0 %v634
    %v779 = vpop.f32.mrf.mxu0
    %v780 = vadd.f32 0.0, %v779
    %v781 = vpop.f32.mrf.mxu0
    %782 = vdwg.mxu0
    %v783 = vadd.f32 %v630, %v780
    %v784 = vxor.u32 %v783, 2147483648
    %v785 = vmul.f32 %v784, 1.442695
    %v786 = vpow.pop %v785
    %v787 = vadd.f32 %v786, 1.0
    %v788 = vrcp.pop %v787
    %v789 = vmul.f32 1.0, %v788
    %v790 = vmul.f32 %v789, 2.0
    %v791 = vsub.f32 %v790, 1.0
    %v792 = vmul.f32 %v712, %v625
    %v793 = vmul.f32 %v712, %v791
    %795 = vrot.lane.b32.xlu0 %v793, 64
    %v796 = vpop.permute.xlu0 %795
    %v798 = vadd.f32 %v792, %v796
    %v799 = vtanh.pop %v798
    %v800 = vmul.f32 %v789, %v799
    %s801 = scalar_lea.vmem [#allocation2], 48
    %v802 = vld [vmem:[%s801] sm:$0xff]
    %v803 = vld [vmem:[%s801 + $0x8] sm:$0xff]
    %805 = vrot.lane.b32.xlu0 %v800, 64
    %v806 = vpop.permute.xlu0 %805
    %v807 = vsel %vm115, %v806, 0
    %809 = vmatprep.subr.mxu0 0.0
    %810 = vmatpush1.msra.mxu0 0.0
    %811 = vmatprep.subr.mxu0 0.0
    %812 = vmatpush1.msra.mxu0 0.0
    %813 = vmatprep.subr.mxu0 0.0
    %814 = vmatpush1.msra.mxu0 0.0
    %815 = vmatprep.subr.mxu0 0.0
    %816 = vmatpush1.msra.mxu0 0.0
    %817 = vmatprep.subr.mxu0 0.0
    %818 = vmatpush1.msra.mxu0 0.0
    %819 = vmatprep.subr.mxu0 0.0
    %820 = vmatpush1.msra.mxu0 0.0
    %821 = vmatprep.subr.mxu0 0.0
    %822 = vmatpush1.msra.mxu0 0.0
    %823 = vmatprep.subr.mxu0 0.0
    %824 = vmatpush1.msra.mxu0 0.0
    %825 = vmatprep.subr.mxu0 0.0
    %826 = vmatpush1.msra.mxu0 %v283
    %827 = vmatprep.subr.mxu0 0.0
    %828 = vmatpush1.msra.mxu0 %v281
    %829 = vmatprep.subr.mxu0 0.0
    %830 = vmatpush1.msra.mxu0 %v279
    %831 = vmatprep.subr.mxu0 0.0
    %832 = vmatpush1.msra.mxu0 %v277
    %833 = vmatprep.subr.mxu0 0.0
    %834 = vmatpush1.msra.mxu0 %v275
    %835 = vmatprep.subr.mxu0 0.0
    %836 = vmatpush1.msra.mxu0 %v273
    %837 = vmatprep.subr.mxu0 0.0
    %838 = vmatpush1.msra.mxu0 %v271
    %839 = vmatprep.subr.mxu0 0.0
    %840 = vmatpush1.msra.mxu0 %v269
    %841 = vmatprep.subr.mxu0 0.0
    %842 = vmatpush2.msra.mxu0 0.0
    %843 = vmatprep.subr.mxu0 0.0
    %844 = vmatpush2.msra.mxu0 0.0
    %845 = vmatprep.subr.mxu0 0.0
    %846 = vmatpush2.msra.mxu0 0.0
    %847 = vmatprep.subr.mxu0 0.0
    %848 = vmatpush2.msra.mxu0 0.0
    %849 = vmatprep.subr.mxu0 0.0
    %850 = vmatpush2.msra.mxu0 0.0
    %851 = vmatprep.subr.mxu0 0.0
    %852 = vmatpush2.msra.mxu0 0.0
    %853 = vmatprep.subr.mxu0 0.0
    %854 = vmatpush2.msra.mxu0 0.0
    %855 = vmatprep.subr.mxu0 0.0
    %856 = vmatpush2.msra.mxu0 0.0
    %857 = vmatprep.subr.mxu0 0.0
    %858 = vmatpush2.msra.mxu0 0.0
    %859 = vmatprep.subr.mxu0 0.0
    %860 = vmatpush2.msra.mxu0 0.0
    %861 = vmatprep.subr.mxu0 0.0
    %862 = vmatpush2.msra.mxu0 0.0
    %863 = vmatprep.subr.mxu0 0.0
    %864 = vmatpush2.msra.mxu0 0.0
    %865 = vmatprep.subr.mxu0 0.0
    %866 = vmatpush2.msra.mxu0 0.0
    %867 = vmatprep.subr.mxu0 0.0
    %868 = vmatpush2.msra.mxu0 0.0
    %869 = vmatprep.subr.mxu0 0.0
    %870 = vmatpush2.msra.mxu0 0.0
    %871 = vmatprep.subr.mxu0 0.0
    %872 = vmatpush2.msra.mxu0 0.0
    %873 = vmatprep.mubr.f32.mxu0 0.0
    %874 = vmatmul.mubr.f32.gmra.mxu0 %v807
    %v875 = vpop.f32.mrf.mxu0
    %v876 = vadd.f32 0.0, %v875
    %v877 = vpop.f32.mrf.mxu0
    %878 = vdwg.mxu0
    %v879 = vadd.f32 %v802, %v876
    %v880 = vxor.u32 %v879, 2147483648
    %v881 = vmul.f32 %v880, 1.442695
    %v882 = vpow.pop %v881
    %v883 = vadd.f32 %v882, 1.0
    %v884 = vrcp.pop %v883
    %v885 = vmul.f32 1.0, %v884
    %886 = vmatprep.subr.mxu0 0.0
    %887 = vmatpush1.msra.mxu0 0.0
    %888 = vmatprep.subr.mxu0 0.0
    %889 = vmatpush1.msra.mxu0 0.0
    %890 = vmatprep.subr.mxu0 0.0
    %891 = vmatpush1.msra.mxu0 0.0
    %892 = vmatprep.subr.mxu0 0.0
    %893 = vmatpush1.msra.mxu0 0.0
    %894 = vmatprep.subr.mxu0 0.0
    %895 = vmatpush1.msra.mxu0 0.0
    %896 = vmatprep.subr.mxu0 0.0
    %897 = vmatpush1.msra.mxu0 0.0
    %898 = vmatprep.subr.mxu0 0.0
    %899 = vmatpush1.msra.mxu0 0.0
    %900 = vmatprep.subr.mxu0 0.0
    %901 = vmatpush1.msra.mxu0 0.0
    %902 = vmatprep.subr.mxu0 0.0
    %903 = vmatpush1.msra.mxu0 %v284
    %904 = vmatprep.subr.mxu0 0.0
    %905 = vmatpush1.msra.mxu0 %v282
    %906 = vmatprep.subr.mxu0 0.0
    %907 = vmatpush1.msra.mxu0 %v280
    %908 = vmatprep.subr.mxu0 0.0
    %909 = vmatpush1.msra.mxu0 %v278
    %910 = vmatprep.subr.mxu0 0.0
    %911 = vmatpush1.msra.mxu0 %v276
    %912 = vmatprep.subr.mxu0 0.0
    %913 = vmatpush1.msra.mxu0 %v274
    %914 = vmatprep.subr.mxu0 0.0
    %915 = vmatpush1.msra.mxu0 %v272
    %916 = vmatprep.subr.mxu0 0.0
    %917 = vmatpush1.msra.mxu0 %v270
    %918 = vmatprep.subr.mxu0 0.0
    %919 = vmatpush2.msra.mxu0 0.0
    %920 = vmatprep.subr.mxu0 0.0
    %921 = vmatpush2.msra.mxu0 0.0
    %922 = vmatprep.subr.mxu0 0.0
    %923 = vmatpush2.msra.mxu0 0.0
    %924 = vmatprep.subr.mxu0 0.0
    %925 = vmatpush2.msra.mxu0 0.0
    %926 = vmatprep.subr.mxu0 0.0
    %927 = vmatpush2.msra.mxu0 0.0
    %928 = vmatprep.subr.mxu0 0.0
    %929 = vmatpush2.msra.mxu0 0.0
    %930 = vmatprep.subr.mxu0 0.0
    %931 = vmatpush2.msra.mxu0 0.0
    %932 = vmatprep.subr.mxu0 0.0
    %933 = vmatpush2.msra.mxu0 0.0
    %934 = vmatprep.subr.mxu0 0.0
    %935 = vmatpush2.msra.mxu0 0.0
    %936 = vmatprep.subr.mxu0 0.0
    %937 = vmatpush2.msra.mxu0 0.0
    %938 = vmatprep.subr.mxu0 0.0
    %939 = vmatpush2.msra.mxu0 0.0
    %940 = vmatprep.subr.mxu0 0.0
    %941 = vmatpush2.msra.mxu0 0.0
    %942 = vmatprep.subr.mxu0 0.0
    %943 = vmatpush2.msra.mxu0 0.0
    %944 = vmatprep.subr.mxu0 0.0
    %945 = vmatpush2.msra.mxu0 0.0
    %946 = vmatprep.subr.mxu0 0.0
    %947 = vmatpush2.msra.mxu0 0.0
    %948 = vmatprep.subr.mxu0 0.0
    %949 = vmatpush2.msra.mxu0 0.0
    %950 = vmatprep.mubr.f32.mxu0 0.0
    %951 = vmatmul.mubr.f32.gmra.mxu0 %v807
    %v952 = vpop.f32.mrf.mxu0
    %v953 = vadd.f32 0.0, %v952
    %v954 = vpop.f32.mrf.mxu0
    %955 = vdwg.mxu0
    %v956 = vadd.f32 %v803, %v953
    %v957 = vxor.u32 %v956, 2147483648
    %v958 = vmul.f32 %v957, 1.442695
    %v959 = vpow.pop %v958
    %v960 = vadd.f32 %v959, 1.0
    %v961 = vrcp.pop %v960
    %v962 = vmul.f32 1.0, %v961
    %v963 = vmul.f32 %v962, 2.0
    %v964 = vsub.f32 %v963, 1.0
    %v965 = vmul.f32 %v885, %v798
    %v966 = vmul.f32 %v885, %v964
    %968 = vrot.lane.b32.xlu0 %v966, 64
    %v969 = vpop.permute.xlu0 %968
    %v971 = vadd.f32 %v965, %v969
    %v972 = vtanh.pop %v971
    %v973 = vmul.f32 %v962, %v972
    %s974 = scalar_lea.vmem [#allocation2], 64
    %v975 = vld [vmem:[%s974] sm:$0xff]
    %v976 = vld [vmem:[%s974 + $0x8] sm:$0xff]
    %978 = vrot.lane.b32.xlu0 %v973, 64
    %v979 = vpop.permute.xlu0 %978
    %v980 = vsel %vm115, %v979, 0
    %982 = vmatprep.subr.mxu0 0.0
    %983 = vmatpush1.msra.mxu0 0.0
    %984 = vmatprep.subr.mxu0 0.0
    %985 = vmatpush1.msra.mxu0 0.0
    %986 = vmatprep.subr.mxu0 0.0
    %987 = vmatpush1.msra.mxu0 0.0
    %988 = vmatprep.subr.mxu0 0.0
    %989 = vmatpush1.msra.mxu0 0.0
    %990 = vmatprep.subr.mxu0 0.0
    %991 = vmatpush1.msra.mxu0 0.0
    %992 = vmatprep.subr.mxu0 0.0
    %993 = vmatpush1.msra.mxu0 0.0
    %994 = vmatprep.subr.mxu0 0.0
    %995 = vmatpush1.msra.mxu0 0.0
    %996 = vmatprep.subr.mxu0 0.0
    %997 = vmatpush1.msra.mxu0 0.0
    %998 = vmatprep.subr.mxu0 0.0
    %999 = vmatpush1.msra.mxu0 %v283
    %1000 = vmatprep.subr.mxu0 0.0
    %1001 = vmatpush1.msra.mxu0 %v281
    %1002 = vmatprep.subr.mxu0 0.0
    %1003 = vmatpush1.msra.mxu0 %v279
    %1004 = vmatprep.subr.mxu0 0.0
    %1005 = vmatpush1.msra.mxu0 %v277
    %1006 = vmatprep.subr.mxu0 0.0
    %1007 = vmatpush1.msra.mxu0 %v275
    %1008 = vmatprep.subr.mxu0 0.0
    %1009 = vmatpush1.msra.mxu0 %v273
    %1010 = vmatprep.subr.mxu0 0.0
    %1011 = vmatpush1.msra.mxu0 %v271
    %1012 = vmatprep.subr.mxu0 0.0
    %1013 = vmatpush1.msra.mxu0 %v269
    %1014 = vmatprep.subr.mxu0 0.0
    %1015 = vmatpush2.msra.mxu0 0.0
    %1016 = vmatprep.subr.mxu0 0.0
    %1017 = vmatpush2.msra.mxu0 0.0
    %1018 = vmatprep.subr.mxu0 0.0
    %1019 = vmatpush2.msra.mxu0 0.0
    %1020 = vmatprep.subr.mxu0 0.0
    %1021 = vmatpush2.msra.mxu0 0.0
    %1022 = vmatprep.subr.mxu0 0.0
    %1023 = vmatpush2.msra.mxu0 0.0
    %1024 = vmatprep.subr.mxu0 0.0
    %1025 = vmatpush2.msra.mxu0 0.0
    %1026 = vmatprep.subr.mxu0 0.0
    %1027 = vmatpush2.msra.mxu0 0.0
    %1028 = vmatprep.subr.mxu0 0.0
    %1029 = vmatpush2.msra.mxu0 0.0
    %1030 = vmatprep.subr.mxu0 0.0
    %1031 = vmatpush2.msra.mxu0 0.0
    %1032 = vmatprep.subr.mxu0 0.0
    %1033 = vmatpush2.msra.mxu0 0.0
    %1034 = vmatprep.subr.mxu0 0.0
    %1035 = vmatpush2.msra.mxu0 0.0
    %1036 = vmatprep.subr.mxu0 0.0
    %1037 = vmatpush2.msra.mxu0 0.0
    %1038 = vmatprep.subr.mxu0 0.0
    %1039 = vmatpush2.msra.mxu0 0.0
    %1040 = vmatprep.subr.mxu0 0.0
    %1041 = vmatpush2.msra.mxu0 0.0
    %1042 = vmatprep.subr.mxu0 0.0
    %1043 = vmatpush2.msra.mxu0 0.0
    %1044 = vmatprep.subr.mxu0 0.0
    %1045 = vmatpush2.msra.mxu0 0.0
    %1046 = vmatprep.mubr.f32.mxu0 0.0
    %1047 = vmatmul.mubr.f32.gmra.mxu0 %v980
    %v1048 = vpop.f32.mrf.mxu0
    %v1049 = vadd.f32 0.0, %v1048
    %v1050 = vpop.f32.mrf.mxu0
    %1051 = vdwg.mxu0
    %v1052 = vadd.f32 %v975, %v1049
    %v1053 = vxor.u32 %v1052, 2147483648
    %v1054 = vmul.f32 %v1053, 1.442695
    %v1055 = vpow.pop %v1054
    %v1056 = vadd.f32 %v1055, 1.0
    %v1057 = vrcp.pop %v1056
    %v1058 = vmul.f32 1.0, %v1057
    %1059 = vmatprep.subr.mxu0 0.0
    %1060 = vmatpush1.msra.mxu0 0.0
    %1061 = vmatprep.subr.mxu0 0.0
    %1062 = vmatpush1.msra.mxu0 0.0
    %1063 = vmatprep.subr.mxu0 0.0
    %1064 = vmatpush1.msra.mxu0 0.0
    %1065 = vmatprep.subr.mxu0 0.0
    %1066 = vmatpush1.msra.mxu0 0.0
    %1067 = vmatprep.subr.mxu0 0.0
    %1068 = vmatpush1.msra.mxu0 0.0
    %1069 = vmatprep.subr.mxu0 0.0
    %1070 = vmatpush1.msra.mxu0 0.0
    %1071 = vmatprep.subr.mxu0 0.0
    %1072 = vmatpush1.msra.mxu0 0.0
    %1073 = vmatprep.subr.mxu0 0.0
    %1074 = vmatpush1.msra.mxu0 0.0
    %1075 = vmatprep.subr.mxu0 0.0
    %1076 = vmatpush1.msra.mxu0 %v284
    %1077 = vmatprep.subr.mxu0 0.0
    %1078 = vmatpush1.msra.mxu0 %v282
    %1079 = vmatprep.subr.mxu0 0.0
    %1080 = vmatpush1.msra.mxu0 %v280
    %1081 = vmatprep.subr.mxu0 0.0
    %1082 = vmatpush1.msra.mxu0 %v278
    %1083 = vmatprep.subr.mxu0 0.0
    %1084 = vmatpush1.msra.mxu0 %v276
    %1085 = vmatprep.subr.mxu0 0.0
    %1086 = vmatpush1.msra.mxu0 %v274
    %1087 = vmatprep.subr.mxu0 0.0
    %1088 = vmatpush1.msra.mxu0 %v272
    %1089 = vmatprep.subr.mxu0 0.0
    %1090 = vmatpush1.msra.mxu0 %v270
    %1091 = vmatprep.subr.mxu0 0.0
    %1092 = vmatpush2.msra.mxu0 0.0
    %1093 = vmatprep.subr.mxu0 0.0
    %1094 = vmatpush2.msra.mxu0 0.0
    %1095 = vmatprep.subr.mxu0 0.0
    %1096 = vmatpush2.msra.mxu0 0.0
    %1097 = vmatprep.subr.mxu0 0.0
    %1098 = vmatpush2.msra.mxu0 0.0
    %1099 = vmatprep.subr.mxu0 0.0
    %1100 = vmatpush2.msra.mxu0 0.0
    %1101 = vmatprep.subr.mxu0 0.0
    %1102 = vmatpush2.msra.mxu0 0.0
    %1103 = vmatprep.subr.mxu0 0.0
    %1104 = vmatpush2.msra.mxu0 0.0
    %1105 = vmatprep.subr.mxu0 0.0
    %1106 = vmatpush2.msra.mxu0 0.0
    %1107 = vmatprep.subr.mxu0 0.0
    %1108 = vmatpush2.msra.mxu0 0.0
    %1109 = vmatprep.subr.mxu0 0.0
    %1110 = vmatpush2.msra.mxu0 0.0
    %1111 = vmatprep.subr.mxu0 0.0
    %1112 = vmatpush2.msra.mxu0 0.0
    %1113 = vmatprep.subr.mxu0 0.0
    %1114 = vmatpush2.msra.mxu0 0.0
    %1115 = vmatprep.subr.mxu0 0.0
    %1116 = vmatpush2.msra.mxu0 0.0
    %1117 = vmatprep.subr.mxu0 0.0
    %1118 = vmatpush2.msra.mxu0 0.0
    %1119 = vmatprep.subr.mxu0 0.0
    %1120 = vmatpush2.msra.mxu0 0.0
    %1121 = vmatprep.subr.mxu0 0.0
    %1122 = vmatpush2.msra.mxu0 0.0
    %1123 = vmatprep.mubr.f32.mxu0 0.0
    %1124 = vmatmul.mubr.f32.gmra.mxu0 %v980
    %v1125 = vpop.f32.mrf.mxu0
    %v1126 = vadd.f32 0.0, %v1125
    %v1127 = vpop.f32.mrf.mxu0
    %1128 = vdwg.mxu0
    %v1129 = vadd.f32 %v976, %v1126
    %v1130 = vxor.u32 %v1129, 2147483648
    %v1131 = vmul.f32 %v1130, 1.442695
    %v1132 = vpow.pop %v1131
    %v1133 = vadd.f32 %v1132, 1.0
    %v1134 = vrcp.pop %v1133
    %v1135 = vmul.f32 1.0, %v1134
    %v1136 = vmul.f32 %v1135, 2.0
    %v1137 = vsub.f32 %v1136, 1.0
    %v1138 = vmul.f32 %v1058, %v971
    %v1139 = vmul.f32 %v1058, %v1137
    %1141 = vrot.lane.b32.xlu0 %v1139, 64
    %v1142 = vpop.permute.xlu0 %1141
    %v1144 = vadd.f32 %v1138, %v1142
    %v1145 = vtanh.pop %v1144
    %v1146 = vmul.f32 %v1135, %v1145
    %s1147 = scalar_lea.vmem [#allocation2], 80
    %v1148 = vld [vmem:[%s1147] sm:$0xff]
    %v1149 = vld [vmem:[%s1147 + $0x8] sm:$0xff]
    %1151 = vrot.lane.b32.xlu0 %v1146, 64
    %v1152 = vpop.permute.xlu0 %1151
    %v1153 = vsel %vm115, %v1152, 0
    %1155 = vmatprep.subr.mxu0 0.0
    %1156 = vmatpush1.msra.mxu0 0.0
    %1157 = vmatprep.subr.mxu0 0.0
    %1158 = vmatpush1.msra.mxu0 0.0
    %1159 = vmatprep.subr.mxu0 0.0
    %1160 = vmatpush1.msra.mxu0 0.0
    %1161 = vmatprep.subr.mxu0 0.0
    %1162 = vmatpush1.msra.mxu0 0.0
    %1163 = vmatprep.subr.mxu0 0.0
    %1164 = vmatpush1.msra.mxu0 0.0
    %1165 = vmatprep.subr.mxu0 0.0
    %1166 = vmatpush1.msra.mxu0 0.0
    %1167 = vmatprep.subr.mxu0 0.0
    %1168 = vmatpush1.msra.mxu0 0.0
    %1169 = vmatprep.subr.mxu0 0.0
    %1170 = vmatpush1.msra.mxu0 0.0
    %1171 = vmatprep.subr.mxu0 0.0
    %1172 = vmatpush1.msra.mxu0 %v283
    %1173 = vmatprep.subr.mxu0 0.0
    %1174 = vmatpush1.msra.mxu0 %v281
    %1175 = vmatprep.subr.mxu0 0.0
    %1176 = vmatpush1.msra.mxu0 %v279
    %1177 = vmatprep.subr.mxu0 0.0
    %1178 = vmatpush1.msra.mxu0 %v277
    %1179 = vmatprep.subr.mxu0 0.0
    %1180 = vmatpush1.msra.mxu0 %v275
    %1181 = vmatprep.subr.mxu0 0.0
    %1182 = vmatpush1.msra.mxu0 %v273
    %1183 = vmatprep.subr.mxu0 0.0
    %1184 = vmatpush1.msra.mxu0 %v271
    %1185 = vmatprep.subr.mxu0 0.0
    %1186 = vmatpush1.msra.mxu0 %v269
    %1187 = vmatprep.subr.mxu0 0.0
    %1188 = vmatpush2.msra.mxu0 0.0
    %1189 = vmatprep.subr.mxu0 0.0
    %1190 = vmatpush2.msra.mxu0 0.0
    %1191 = vmatprep.subr.mxu0 0.0
    %1192 = vmatpush2.msra.mxu0 0.0
    %1193 = vmatprep.subr.mxu0 0.0
    %1194 = vmatpush2.msra.mxu0 0.0
    %1195 = vmatprep.subr.mxu0 0.0
    %1196 = vmatpush2.msra.mxu0 0.0
    %1197 = vmatprep.subr.mxu0 0.0
    %1198 = vmatpush2.msra.mxu0 0.0
    %1199 = vmatprep.subr.mxu0 0.0
    %1200 = vmatpush2.msra.mxu0 0.0
    %1201 = vmatprep.subr.mxu0 0.0
    %1202 = vmatpush2.msra.mxu0 0.0
    %1203 = vmatprep.subr.mxu0 0.0
    %1204 = vmatpush2.msra.mxu0 0.0
    %1205 = vmatprep.subr.mxu0 0.0
    %1206 = vmatpush2.msra.mxu0 0.0
    %1207 = vmatprep.subr.mxu0 0.0
    %1208 = vmatpush2.msra.mxu0 0.0
    %1209 = vmatprep.subr.mxu0 0.0
    %1210 = vmatpush2.msra.mxu0 0.0
    %1211 = vmatprep.subr.mxu0 0.0
    %1212 = vmatpush2.msra.mxu0 0.0
    %1213 = vmatprep.subr.mxu0 0.0
    %1214 = vmatpush2.msra.mxu0 0.0
    %1215 = vmatprep.subr.mxu0 0.0
    %1216 = vmatpush2.msra.mxu0 0.0
    %1217 = vmatprep.subr.mxu0 0.0
    %1218 = vmatpush2.msra.mxu0 0.0
    %1219 = vmatprep.mubr.f32.mxu0 0.0
    %1220 = vmatmul.mubr.f32.gmra.mxu0 %v1153
    %v1221 = vpop.f32.mrf.mxu0
    %v1222 = vadd.f32 0.0, %v1221
    %v1223 = vpop.f32.mrf.mxu0
    %1224 = vdwg.mxu0
    %v1225 = vadd.f32 %v1148, %v1222
    %v1226 = vxor.u32 %v1225, 2147483648
    %v1227 = vmul.f32 %v1226, 1.442695
    %v1228 = vpow.pop %v1227
    %v1229 = vadd.f32 %v1228, 1.0
    %v1230 = vrcp.pop %v1229
    %v1231 = vmul.f32 1.0, %v1230
    %1232 = vmatprep.subr.mxu0 0.0
    %1233 = vmatpush1.msra.mxu0 0.0
    %1234 = vmatprep.subr.mxu0 0.0
    %1235 = vmatpush1.msra.mxu0 0.0
    %1236 = vmatprep.subr.mxu0 0.0
    %1237 = vmatpush1.msra.mxu0 0.0
    %1238 = vmatprep.subr.mxu0 0.0
    %1239 = vmatpush1.msra.mxu0 0.0
    %1240 = vmatprep.subr.mxu0 0.0
    %1241 = vmatpush1.msra.mxu0 0.0
    %1242 = vmatprep.subr.mxu0 0.0
    %1243 = vmatpush1.msra.mxu0 0.0
    %1244 = vmatprep.subr.mxu0 0.0
    %1245 = vmatpush1.msra.mxu0 0.0
    %1246 = vmatprep.subr.mxu0 0.0
    %1247 = vmatpush1.msra.mxu0 0.0
    %1248 = vmatprep.subr.mxu0 0.0
    %1249 = vmatpush1.msra.mxu0 %v284
    %1250 = vmatprep.subr.mxu0 0.0
    %1251 = vmatpush1.msra.mxu0 %v282
    %1252 = vmatprep.subr.mxu0 0.0
    %1253 = vmatpush1.msra.mxu0 %v280
    %1254 = vmatprep.subr.mxu0 0.0
    %1255 = vmatpush1.msra.mxu0 %v278
    %1256 = vmatprep.subr.mxu0 0.0
    %1257 = vmatpush1.msra.mxu0 %v276
    %1258 = vmatprep.subr.mxu0 0.0
    %1259 = vmatpush1.msra.mxu0 %v274
    %1260 = vmatprep.subr.mxu0 0.0
    %1261 = vmatpush1.msra.mxu0 %v272
    %1262 = vmatprep.subr.mxu0 0.0
    %1263 = vmatpush1.msra.mxu0 %v270
    %1264 = vmatprep.subr.mxu0 0.0
    %1265 = vmatpush2.msra.mxu0 0.0
    %1266 = vmatprep.subr.mxu0 0.0
    %1267 = vmatpush2.msra.mxu0 0.0
    %1268 = vmatprep.subr.mxu0 0.0
    %1269 = vmatpush2.msra.mxu0 0.0
    %1270 = vmatprep.subr.mxu0 0.0
    %1271 = vmatpush2.msra.mxu0 0.0
    %1272 = vmatprep.subr.mxu0 0.0
    %1273 = vmatpush2.msra.mxu0 0.0
    %1274 = vmatprep.subr.mxu0 0.0
    %1275 = vmatpush2.msra.mxu0 0.0
    %1276 = vmatprep.subr.mxu0 0.0
    %1277 = vmatpush2.msra.mxu0 0.0
    %1278 = vmatprep.subr.mxu0 0.0
    %1279 = vmatpush2.msra.mxu0 0.0
    %1280 = vmatprep.subr.mxu0 0.0
    %1281 = vmatpush2.msra.mxu0 0.0
    %1282 = vmatprep.subr.mxu0 0.0
    %1283 = vmatpush2.msra.mxu0 0.0
    %1284 = vmatprep.subr.mxu0 0.0
    %1285 = vmatpush2.msra.mxu0 0.0
    %1286 = vmatprep.subr.mxu0 0.0
    %1287 = vmatpush2.msra.mxu0 0.0
    %1288 = vmatprep.subr.mxu0 0.0
    %1289 = vmatpush2.msra.mxu0 0.0
    %1290 = vmatprep.subr.mxu0 0.0
    %1291 = vmatpush2.msra.mxu0 0.0
    %1292 = vmatprep.subr.mxu0 0.0
    %1293 = vmatpush2.msra.mxu0 0.0
    %1294 = vmatprep.subr.mxu0 0.0
    %1295 = vmatpush2.msra.mxu0 0.0
    %1296 = vmatprep.mubr.f32.mxu0 0.0
    %1297 = vmatmul.mubr.f32.gmra.mxu0 %v1153
    %v1298 = vpop.f32.mrf.mxu0
    %v1299 = vadd.f32 0.0, %v1298
    %v1300 = vpop.f32.mrf.mxu0
    %1301 = vdwg.mxu0
    %v1302 = vadd.f32 %v1149, %v1299
    %v1303 = vxor.u32 %v1302, 2147483648
    %v1304 = vmul.f32 %v1303, 1.442695
    %v1305 = vpow.pop %v1304
    %v1306 = vadd.f32 %v1305, 1.0
    %v1307 = vrcp.pop %v1306
    %v1308 = vmul.f32 1.0, %v1307
    %v1309 = vmul.f32 %v1308, 2.0
    %v1310 = vsub.f32 %v1309, 1.0
    %v1311 = vmul.f32 %v1231, %v1144
    %v1312 = vmul.f32 %v1231, %v1310
    %1314 = vrot.lane.b32.xlu0 %v1312, 64
    %v1315 = vpop.permute.xlu0 %1314
    %v1317 = vadd.f32 %v1311, %v1315
    %v1318 = vtanh.pop %v1317
    %v1319 = vmul.f32 %v1308, %v1318
    %s1320 = scalar_lea.vmem [#allocation2], 96
    %v1321 = vld [vmem:[%s1320] sm:$0xff]
    %v1322 = vld [vmem:[%s1320 + $0x8] sm:$0xff]
    %1324 = vrot.lane.b32.xlu0 %v1319, 64
    %v1325 = vpop.permute.xlu0 %1324
    %v1326 = vsel %vm115, %v1325, 0
    %1328 = vmatprep.subr.mxu0 0.0
    %1329 = vmatpush1.msra.mxu0 0.0
    %1330 = vmatprep.subr.mxu0 0.0
    %1331 = vmatpush1.msra.mxu0 0.0
    %1332 = vmatprep.subr.mxu0 0.0
    %1333 = vmatpush1.msra.mxu0 0.0
    %1334 = vmatprep.subr.mxu0 0.0
    %1335 = vmatpush1.msra.mxu0 0.0
    %1336 = vmatprep.subr.mxu0 0.0
    %1337 = vmatpush1.msra.mxu0 0.0
    %1338 = vmatprep.subr.mxu0 0.0
    %1339 = vmatpush1.msra.mxu0 0.0
    %1340 = vmatprep.subr.mxu0 0.0
    %1341 = vmatpush1.msra.mxu0 0.0
    %1342 = vmatprep.subr.mxu0 0.0
    %1343 = vmatpush1.msra.mxu0 0.0
    %1344 = vmatprep.subr.mxu0 0.0
    %1345 = vmatpush1.msra.mxu0 %v283
    %1346 = vmatprep.subr.mxu0 0.0
    %1347 = vmatpush1.msra.mxu0 %v281
    %1348 = vmatprep.subr.mxu0 0.0
    %1349 = vmatpush1.msra.mxu0 %v279
    %1350 = vmatprep.subr.mxu0 0.0
    %1351 = vmatpush1.msra.mxu0 %v277
    %1352 = vmatprep.subr.mxu0 0.0
    %1353 = vmatpush1.msra.mxu0 %v275
    %1354 = vmatprep.subr.mxu0 0.0
    %1355 = vmatpush1.msra.mxu0 %v273
    %1356 = vmatprep.subr.mxu0 0.0
    %1357 = vmatpush1.msra.mxu0 %v271
    %1358 = vmatprep.subr.mxu0 0.0
    %1359 = vmatpush1.msra.mxu0 %v269
    %1360 = vmatprep.subr.mxu0 0.0
    %1361 = vmatpush2.msra.mxu0 0.0
    %1362 = vmatprep.subr.mxu0 0.0
    %1363 = vmatpush2.msra.mxu0 0.0
    %1364 = vmatprep.subr.mxu0 0.0
    %1365 = vmatpush2.msra.mxu0 0.0
    %1366 = vmatprep.subr.mxu0 0.0
    %1367 = vmatpush2.msra.mxu0 0.0
    %1368 = vmatprep.subr.mxu0 0.0
    %1369 = vmatpush2.msra.mxu0 0.0
    %1370 = vmatprep.subr.mxu0 0.0
    %1371 = vmatpush2.msra.mxu0 0.0
    %1372 = vmatprep.subr.mxu0 0.0
    %1373 = vmatpush2.msra.mxu0 0.0
    %1374 = vmatprep.subr.mxu0 0.0
    %1375 = vmatpush2.msra.mxu0 0.0
    %1376 = vmatprep.subr.mxu0 0.0
    %1377 = vmatpush2.msra.mxu0 0.0
    %1378 = vmatprep.subr.mxu0 0.0
    %1379 = vmatpush2.msra.mxu0 0.0
    %1380 = vmatprep.subr.mxu0 0.0
    %1381 = vmatpush2.msra.mxu0 0.0
    %1382 = vmatprep.subr.mxu0 0.0
    %1383 = vmatpush2.msra.mxu0 0.0
    %1384 = vmatprep.subr.mxu0 0.0
    %1385 = vmatpush2.msra.mxu0 0.0
    %1386 = vmatprep.subr.mxu0 0.0
    %1387 = vmatpush2.msra.mxu0 0.0
    %1388 = vmatprep.subr.mxu0 0.0
    %1389 = vmatpush2.msra.mxu0 0.0
    %1390 = vmatprep.subr.mxu0 0.0
    %1391 = vmatpush2.msra.mxu0 0.0
    %1392 = vmatprep.mubr.f32.mxu0 0.0
    %1393 = vmatmul.mubr.f32.gmra.mxu0 %v1326
    %v1394 = vpop.f32.mrf.mxu0
    %v1395 = vadd.f32 0.0, %v1394
    %v1396 = vpop.f32.mrf.mxu0
    %1397 = vdwg.mxu0
    %v1398 = vadd.f32 %v1321, %v1395
    %v1399 = vxor.u32 %v1398, 2147483648
    %v1400 = vmul.f32 %v1399, 1.442695
    %v1401 = vpow.pop %v1400
    %v1402 = vadd.f32 %v1401, 1.0
    %v1403 = vrcp.pop %v1402
    %v1404 = vmul.f32 1.0, %v1403
    %1405 = vmatprep.subr.mxu0 0.0
    %1406 = vmatpush1.msra.mxu0 0.0
    %1407 = vmatprep.subr.mxu0 0.0
    %1408 = vmatpush1.msra.mxu0 0.0
    %1409 = vmatprep.subr.mxu0 0.0
    %1410 = vmatpush1.msra.mxu0 0.0
    %1411 = vmatprep.subr.mxu0 0.0
    %1412 = vmatpush1.msra.mxu0 0.0
    %1413 = vmatprep.subr.mxu0 0.0
    %1414 = vmatpush1.msra.mxu0 0.0
    %1415 = vmatprep.subr.mxu0 0.0
    %1416 = vmatpush1.msra.mxu0 0.0
    %1417 = vmatprep.subr.mxu0 0.0
    %1418 = vmatpush1.msra.mxu0 0.0
    %1419 = vmatprep.subr.mxu0 0.0
    %1420 = vmatpush1.msra.mxu0 0.0
    %1421 = vmatprep.subr.mxu0 0.0
    %1422 = vmatpush1.msra.mxu0 %v284
    %1423 = vmatprep.subr.mxu0 0.0
    %1424 = vmatpush1.msra.mxu0 %v282
    %1425 = vmatprep.subr.mxu0 0.0
    %1426 = vmatpush1.msra.mxu0 %v280
    %1427 = vmatprep.subr.mxu0 0.0
    %1428 = vmatpush1.msra.mxu0 %v278
    %1429 = vmatprep.subr.mxu0 0.0
    %1430 = vmatpush1.msra.mxu0 %v276
    %1431 = vmatprep.subr.mxu0 0.0
    %1432 = vmatpush1.msra.mxu0 %v274
    %1433 = vmatprep.subr.mxu0 0.0
    %1434 = vmatpush1.msra.mxu0 %v272
    %1435 = vmatprep.subr.mxu0 0.0
    %1436 = vmatpush1.msra.mxu0 %v270
    %1437 = vmatprep.subr.mxu0 0.0
    %1438 = vmatpush2.msra.mxu0 0.0
    %1439 = vmatprep.subr.mxu0 0.0
    %1440 = vmatpush2.msra.mxu0 0.0
    %1441 = vmatprep.subr.mxu0 0.0
    %1442 = vmatpush2.msra.mxu0 0.0
    %1443 = vmatprep.subr.mxu0 0.0
    %1444 = vmatpush2.msra.mxu0 0.0
    %1445 = vmatprep.subr.mxu0 0.0
    %1446 = vmatpush2.msra.mxu0 0.0
    %1447 = vmatprep.subr.mxu0 0.0
    %1448 = vmatpush2.msra.mxu0 0.0
    %1449 = vmatprep.subr.mxu0 0.0
    %1450 = vmatpush2.msra.mxu0 0.0
    %1451 = vmatprep.subr.mxu0 0.0
    %1452 = vmatpush2.msra.mxu0 0.0
    %1453 = vmatprep.subr.mxu0 0.0
    %1454 = vmatpush2.msra.mxu0 0.0
    %1455 = vmatprep.subr.mxu0 0.0
    %1456 = vmatpush2.msra.mxu0 0.0
    %1457 = vmatprep.subr.mxu0 0.0
    %1458 = vmatpush2.msra.mxu0 0.0
    %1459 = vmatprep.subr.mxu0 0.0
    %1460 = vmatpush2.msra.mxu0 0.0
    %1461 = vmatprep.subr.mxu0 0.0
    %1462 = vmatpush2.msra.mxu0 0.0
    %1463 = vmatprep.subr.mxu0 0.0
    %1464 = vmatpush2.msra.mxu0 0.0
    %1465 = vmatprep.subr.mxu0 0.0
    %1466 = vmatpush2.msra.mxu0 0.0
    %1467 = vmatprep.subr.mxu0 0.0
    %1468 = vmatpush2.msra.mxu0 0.0
    %1469 = vmatprep.mubr.f32.mxu0 0.0
    %1470 = vmatmul.mubr.f32.gmra.mxu0 %v1326
    %v1471 = vpop.f32.mrf.mxu0
    %v1472 = vadd.f32 0.0, %v1471
    %v1473 = vpop.f32.mrf.mxu0
    %1474 = vdwg.mxu0
    %v1475 = vadd.f32 %v1322, %v1472
    %v1476 = vxor.u32 %v1475, 2147483648
    %v1477 = vmul.f32 %v1476, 1.442695
    %v1478 = vpow.pop %v1477
    %v1479 = vadd.f32 %v1478, 1.0
    %v1480 = vrcp.pop %v1479
    %v1481 = vmul.f32 1.0, %v1480
    %v1482 = vmul.f32 %v1481, 2.0
    %v1483 = vsub.f32 %v1482, 1.0
    %v1484 = vmul.f32 %v1404, %v1317
    %v1485 = vmul.f32 %v1404, %v1483
    %1487 = vrot.lane.b32.xlu0 %v1485, 64
    %v1488 = vpop.permute.xlu0 %1487
    %v1490 = vadd.f32 %v1484, %v1488
    %v1491 = vtanh.pop %v1490
    %v1492 = vmul.f32 %v1481, %v1491
    %s1493 = scalar_lea.vmem [#allocation2], 112
    %v1494 = vld [vmem:[%s1493] sm:$0xff]
    %v1495 = vld [vmem:[%s1493 + $0x8] sm:$0xff]
    %1497 = vrot.lane.b32.xlu0 %v1492, 64
    %v1498 = vpop.permute.xlu0 %1497
    %v1499 = vsel %vm115, %v1498, 0
    %1501 = vmatprep.subr.mxu0 0.0
    %1502 = vmatpush1.msra.mxu0 0.0
    %1503 = vmatprep.subr.mxu0 0.0
    %1504 = vmatpush1.msra.mxu0 0.0
    %1505 = vmatprep.subr.mxu0 0.0
    %1506 = vmatpush1.msra.mxu0 0.0
    %1507 = vmatprep.subr.mxu0 0.0
    %1508 = vmatpush1.msra.mxu0 0.0
    %1509 = vmatprep.subr.mxu0 0.0
    %1510 = vmatpush1.msra.mxu0 0.0
    %1511 = vmatprep.subr.mxu0 0.0
    %1512 = vmatpush1.msra.mxu0 0.0
    %1513 = vmatprep.subr.mxu0 0.0
    %1514 = vmatpush1.msra.mxu0 0.0
    %1515 = vmatprep.subr.mxu0 0.0
    %1516 = vmatpush1.msra.mxu0 0.0
    %1517 = vmatprep.subr.mxu0 0.0
    %1518 = vmatpush1.msra.mxu0 %v283
    %1519 = vmatprep.subr.mxu0 0.0
    %1520 = vmatpush1.msra.mxu0 %v281
    %1521 = vmatprep.subr.mxu0 0.0
    %1522 = vmatpush1.msra.mxu0 %v279
    %1523 = vmatprep.subr.mxu0 0.0
    %1524 = vmatpush1.msra.mxu0 %v277
    %1525 = vmatprep.subr.mxu0 0.0
    %1526 = vmatpush1.msra.mxu0 %v275
    %1527 = vmatprep.subr.mxu0 0.0
    %1528 = vmatpush1.msra.mxu0 %v273
    %1529 = vmatprep.subr.mxu0 0.0
    %1530 = vmatpush1.msra.mxu0 %v271
    %1531 = vmatprep.subr.mxu0 0.0
    %1532 = vmatpush1.msra.mxu0 %v269
    %1533 = vmatprep.subr.mxu0 0.0
    %1534 = vmatpush2.msra.mxu0 0.0
    %1535 = vmatprep.subr.mxu0 0.0
    %1536 = vmatpush2.msra.mxu0 0.0
    %1537 = vmatprep.subr.mxu0 0.0
    %1538 = vmatpush2.msra.mxu0 0.0
    %1539 = vmatprep.subr.mxu0 0.0
    %1540 = vmatpush2.msra.mxu0 0.0
    %1541 = vmatprep.subr.mxu0 0.0
    %1542 = vmatpush2.msra.mxu0 0.0
    %1543 = vmatprep.subr.mxu0 0.0
    %1544 = vmatpush2.msra.mxu0 0.0
    %1545 = vmatprep.subr.mxu0 0.0
    %1546 = vmatpush2.msra.mxu0 0.0
    %1547 = vmatprep.subr.mxu0 0.0
    %1548 = vmatpush2.msra.mxu0 0.0
    %1549 = vmatprep.subr.mxu0 0.0
    %1550 = vmatpush2.msra.mxu0 0.0
    %1551 = vmatprep.subr.mxu0 0.0
    %1552 = vmatpush2.msra.mxu0 0.0
    %1553 = vmatprep.subr.mxu0 0.0
    %1554 = vmatpush2.msra.mxu0 0.0
    %1555 = vmatprep.subr.mxu0 0.0
    %1556 = vmatpush2.msra.mxu0 0.0
    %1557 = vmatprep.subr.mxu0 0.0
    %1558 = vmatpush2.msra.mxu0 0.0
    %1559 = vmatprep.subr.mxu0 0.0
    %1560 = vmatpush2.msra.mxu0 0.0
    %1561 = vmatprep.subr.mxu0 0.0
    %1562 = vmatpush2.msra.mxu0 0.0
    %1563 = vmatprep.subr.mxu0 0.0
    %1564 = vmatpush2.msra.mxu0 0.0
    %1565 = vmatprep.mubr.f32.mxu0 0.0
    %1566 = vmatmul.mubr.f32.gmra.mxu0 %v1499
    %v1567 = vpop.f32.mrf.mxu0
    %v1568 = vadd.f32 0.0, %v1567
    %v1569 = vpop.f32.mrf.mxu0
    %1570 = vdwg.mxu0
    %v1571 = vadd.f32 %v1494, %v1568
    %v1572 = vxor.u32 %v1571, 2147483648
    %v1573 = vmul.f32 %v1572, 1.442695
    %v1574 = vpow.pop %v1573
    %v1575 = vadd.f32 %v1574, 1.0
    %v1576 = vrcp.pop %v1575
    %v1577 = vmul.f32 1.0, %v1576
    %1578 = vmatprep.subr.mxu0 0.0
    %1579 = vmatpush1.msra.mxu0 0.0
    %1580 = vmatprep.subr.mxu0 0.0
    %1581 = vmatpush1.msra.mxu0 0.0
    %1582 = vmatprep.subr.mxu0 0.0
    %1583 = vmatpush1.msra.mxu0 0.0
    %1584 = vmatprep.subr.mxu0 0.0
    %1585 = vmatpush1.msra.mxu0 0.0
    %1586 = vmatprep.subr.mxu0 0.0
    %1587 = vmatpush1.msra.mxu0 0.0
    %1588 = vmatprep.subr.mxu0 0.0
    %1589 = vmatpush1.msra.mxu0 0.0
    %1590 = vmatprep.subr.mxu0 0.0
    %1591 = vmatpush1.msra.mxu0 0.0
    %1592 = vmatprep.subr.mxu0 0.0
    %1593 = vmatpush1.msra.mxu0 0.0
    %1594 = vmatprep.subr.mxu0 0.0
    %1595 = vmatpush1.msra.mxu0 %v284
    %1596 = vmatprep.subr.mxu0 0.0
    %1597 = vmatpush1.msra.mxu0 %v282
    %1598 = vmatprep.subr.mxu0 0.0
    %1599 = vmatpush1.msra.mxu0 %v280
    %1600 = vmatprep.subr.mxu0 0.0
    %1601 = vmatpush1.msra.mxu0 %v278
    %1602 = vmatprep.subr.mxu0 0.0
    %1603 = vmatpush1.msra.mxu0 %v276
    %1604 = vmatprep.subr.mxu0 0.0
    %1605 = vmatpush1.msra.mxu0 %v274
    %1606 = vmatprep.subr.mxu0 0.0
    %1607 = vmatpush1.msra.mxu0 %v272
    %1608 = vmatprep.subr.mxu0 0.0
    %1609 = vmatpush1.msra.mxu0 %v270
    %1610 = vmatprep.subr.mxu0 0.0
    %1611 = vmatpush2.msra.mxu0 0.0
    %1612 = vmatprep.subr.mxu0 0.0
    %1613 = vmatpush2.msra.mxu0 0.0
    %1614 = vmatprep.subr.mxu0 0.0
    %1615 = vmatpush2.msra.mxu0 0.0
    %1616 = vmatprep.subr.mxu0 0.0
    %1617 = vmatpush2.msra.mxu0 0.0
    %1618 = vmatprep.subr.mxu0 0.0
    %1619 = vmatpush2.msra.mxu0 0.0
    %1620 = vmatprep.subr.mxu0 0.0
    %1621 = vmatpush2.msra.mxu0 0.0
    %1622 = vmatprep.subr.mxu0 0.0
    %1623 = vmatpush2.msra.mxu0 0.0
    %1624 = vmatprep.subr.mxu0 0.0
    %1625 = vmatpush2.msra.mxu0 0.0
    %1626 = vmatprep.subr.mxu0 0.0
    %1627 = vmatpush2.msra.mxu0 0.0
    %1628 = vmatprep.subr.mxu0 0.0
    %1629 = vmatpush2.msra.mxu0 0.0
    %1630 = vmatprep.subr.mxu0 0.0
    %1631 = vmatpush2.msra.mxu0 0.0
    %1632 = vmatprep.subr.mxu0 0.0
    %1633 = vmatpush2.msra.mxu0 0.0
    %1634 = vmatprep.subr.mxu0 0.0
    %1635 = vmatpush2.msra.mxu0 0.0
    %1636 = vmatprep.subr.mxu0 0.0
    %1637 = vmatpush2.msra.mxu0 0.0
    %1638 = vmatprep.subr.mxu0 0.0
    %1639 = vmatpush2.msra.mxu0 0.0
    %1640 = vmatprep.subr.mxu0 0.0
    %1641 = vmatpush2.msra.mxu0 0.0
    %1642 = vmatprep.mubr.f32.mxu0 0.0
    %1643 = vmatmul.mubr.f32.gmra.mxu0 %v1499
    %v1644 = vpop.f32.mrf.mxu0
    %v1645 = vadd.f32 0.0, %v1644
    %v1646 = vpop.f32.mrf.mxu0
    %1647 = vdwg.mxu0
    %v1648 = vadd.f32 %v1495, %v1645
    %v1649 = vxor.u32 %v1648, 2147483648
    %v1650 = vmul.f32 %v1649, 1.442695
    %v1651 = vpow.pop %v1650
    %v1652 = vadd.f32 %v1651, 1.0
    %v1653 = vrcp.pop %v1652
    %v1654 = vmul.f32 1.0, %v1653
    %v1655 = vmul.f32 %v1654, 2.0
    %v1656 = vsub.f32 %v1655, 1.0
    %v1657 = vmul.f32 %v1577, %v1490
    %v1658 = vmul.f32 %v1577, %v1656
    %1660 = vrot.lane.b32.xlu0 %v1658, 64
    %v1661 = vpop.permute.xlu0 %1660
    %v1663 = vadd.f32 %v1657, %v1661
    %v1664 = vtanh.pop %v1663
    %v1665 = vmul.f32 %v1654, %v1664
    %v1666 = vld [vmem:[#allocation9] sm:$0xff]
    %v1667 = vld [vmem:[#allocation9 + $0x8] sm:$0xff]
    %v1668 = vld [vmem:[#allocation9 + $0x10] sm:$0xff]
    %v1669 = vld [vmem:[#allocation9 + $0x18] sm:$0xff]
    %v1670 = vld [vmem:[#allocation9 + $0x20] sm:$0xff]
    %v1671 = vld [vmem:[#allocation9 + $0x28] sm:$0xff]
    %v1672 = vld [vmem:[#allocation9 + $0x30] sm:$0xff]
    %v1673 = vld [vmem:[#allocation9 + $0x38] sm:$0xff]
    %v1674 = vld [vmem:[%s5] sm:$0x1]
    %v1676 = vlaneseq
    %v1677 = vshrl.u32 %v1676, 7
    %v1678 = vsub.s32 0, %v1677
    %v1679 = vrot.slane %v1674, %v1678
    %1682 = vrot.lane.b32.xlu0 %v1665, 64
    %v1683 = vpop.permute.xlu0 %1682
    %v1684 = vsel %vm115, %v1683, 0
    %1686 = vmatprep.subr.mxu0 0.0
    %1687 = vmatpush1.msra.mxu0 0.0
    %1688 = vmatprep.subr.mxu0 0.0
    %1689 = vmatpush1.msra.mxu0 0.0
    %1690 = vmatprep.subr.mxu0 0.0
    %1691 = vmatpush1.msra.mxu0 0.0
    %1692 = vmatprep.subr.mxu0 0.0
    %1693 = vmatpush1.msra.mxu0 0.0
    %1694 = vmatprep.subr.mxu0 0.0
    %1695 = vmatpush1.msra.mxu0 0.0
    %1696 = vmatprep.subr.mxu0 0.0
    %1697 = vmatpush1.msra.mxu0 0.0
    %1698 = vmatprep.subr.mxu0 0.0
    %1699 = vmatpush1.msra.mxu0 0.0
    %1700 = vmatprep.subr.mxu0 0.0
    %1701 = vmatpush1.msra.mxu0 0.0
    %1702 = vmatprep.subr.mxu0 0.0
    %1703 = vmatpush1.msra.mxu0 %v1673
    %1704 = vmatprep.subr.mxu0 0.0
    %1705 = vmatpush1.msra.mxu0 %v1672
    %1706 = vmatprep.subr.mxu0 0.0
    %1707 = vmatpush1.msra.mxu0 %v1671
    %1708 = vmatprep.subr.mxu0 0.0
    %1709 = vmatpush1.msra.mxu0 %v1670
    %1710 = vmatprep.subr.mxu0 0.0
    %1711 = vmatpush1.msra.mxu0 %v1669
    %1712 = vmatprep.subr.mxu0 0.0
    %1713 = vmatpush1.msra.mxu0 %v1668
    %1714 = vmatprep.subr.mxu0 0.0
    %1715 = vmatpush1.msra.mxu0 %v1667
    %1716 = vmatprep.subr.mxu0 0.0
    %1717 = vmatpush1.msra.mxu0 %v1666
    %1718 = vmatprep.subr.mxu0 0.0
    %1719 = vmatpush2.msra.mxu0 0.0
    %1720 = vmatprep.subr.mxu0 0.0
    %1721 = vmatpush2.msra.mxu0 0.0
    %1722 = vmatprep.subr.mxu0 0.0
    %1723 = vmatpush2.msra.mxu0 0.0
    %1724 = vmatprep.subr.mxu0 0.0
    %1725 = vmatpush2.msra.mxu0 0.0
    %1726 = vmatprep.subr.mxu0 0.0
    %1727 = vmatpush2.msra.mxu0 0.0
    %1728 = vmatprep.subr.mxu0 0.0
    %1729 = vmatpush2.msra.mxu0 0.0
    %1730 = vmatprep.subr.mxu0 0.0
    %1731 = vmatpush2.msra.mxu0 0.0
    %1732 = vmatprep.subr.mxu0 0.0
    %1733 = vmatpush2.msra.mxu0 0.0
    %1734 = vmatprep.subr.mxu0 0.0
    %1735 = vmatpush2.msra.mxu0 0.0
    %1736 = vmatprep.subr.mxu0 0.0
    %1737 = vmatpush2.msra.mxu0 0.0
    %1738 = vmatprep.subr.mxu0 0.0
    %1739 = vmatpush2.msra.mxu0 0.0
    %1740 = vmatprep.subr.mxu0 0.0
    %1741 = vmatpush2.msra.mxu0 0.0
    %1742 = vmatprep.subr.mxu0 0.0
    %1743 = vmatpush2.msra.mxu0 0.0
    %1744 = vmatprep.subr.mxu0 0.0
    %1745 = vmatpush2.msra.mxu0 0.0
    %1746 = vmatprep.subr.mxu0 0.0
    %1747 = vmatpush2.msra.mxu0 0.0
    %1748 = vmatprep.subr.mxu0 0.0
    %1749 = vmatpush2.msra.mxu0 0.0
    %1750 = vmatprep.mubr.f32.mxu0 0.0
    %1751 = vmatmul.mubr.f32.gmra.mxu0 %v1684
    %v1752 = vpop.f32.mrf.mxu0
    %v1753 = vadd.f32 %v1679, %v1752
    %v1754 = vpop.f32.mrf.mxu0
    %1755 = vdwg.mxu0
    %1756 = vst [vmem:[#allocation11] sm:$0xff] %v1753
    // Predicated region
    $region42: #{tpu_custom_call.1} parent=1 // pred_check
      _
    $region43: #{tpu_custom_call.1} parent=1 // pred_check_branch
      %1758 = sbr.rel (0) target = $region45
    $region44: #{tpu_custom_call.1} parent=1 // pred_region
      %s1760 = ssub.s32 128, 128
      %1761 = vsyncadd [#allocation5], %s1760
      %s1763 = sshll.u32 [#allocation11], 4
      %s1764 = int_to_ptr.vmem [resolvable:$true] %s1763
      %1766 = dma.vmem_to_hbm [thread:$0]  %s1764, 128, %s6, [#allocation5]
    $region45: #{tpu_custom_call.1} parent=1 // pred_fallthru
      _
    // Predicated region
    $region46: #{tpu_custom_call.1} parent=1 // pred_check
      _
    $region47: #{tpu_custom_call.1} parent=1 // pred_check_branch
      %1768 = sbr.rel (0) target = $region49
    $region48: #{tpu_custom_call.1} parent=1 // pred_region
      %1769 = dma.done [#allocation5], 128
    $region49: #{tpu_custom_call.1} parent=1 // pred_fallthru
      _
    %1770 = vsyncpa [#allocation4], 1
    %1771 = vsyncpa [#allocation7], 1
    %1772 = vsyncpa [#allocation10], 1
    %1773 = vsyncpa [#allocation5], 1

</llo_original>
